<compile_context>
chip_gen: v6e
topology: v6e:2x2x1
jax: 0.10.0
libtpu: 0.0.40
codegen_flags: <defaults>
</compile_context>

<pallas_src>
import functools

import jax
import jax.numpy as jnp
from jax.experimental import pallas as pl
from jax.experimental.pallas import tpu as pltpu


def _round_up(x, m):
    return ((x + m - 1) // m) * m


def _softplus(x):
    # Numerically-stable softplus (== F.softplus), usable inside Pallas and in JAX.
    return jnp.maximum(x, 0.0) + jnp.log(1.0 + jnp.exp(-jnp.abs(x)))


def _swish(y):
    return y * (1.0 / (1.0 + jnp.exp(-y)))


# ---------------------------------------------------------------------------
# Fused EnsembleModel forward kernel
#   refs layout (all leading dim 1 = current ensemble member block):
#     x_ref                       (1, TM, IN)
#     [w_i, b_i] * num_hidden     (1, IN_i, H_i), (1, 1, H_i)
#     wm, bm, wv, bv              (1, H, D_pad), (1, 1, D_pad)  (nn5 split mean/raw)
#     maxlv, minlv                (1, D_pad)
#     mean_ref, var_ref           (1, TM, D_pad)
# ---------------------------------------------------------------------------
def _ensemble_model_kernel(*refs, num_hidden, ret_log_var):
    idx = 0
    x_ref = refs[idx]; idx += 1

    h = x_ref[0]  # (TM, IN)
    for _ in range(num_hidden):
        w_ref, b_ref = refs[idx], refs[idx + 1]
        idx += 2
        y = jnp.dot(h, w_ref[0], preferred_element_type=jnp.float32) + b_ref[0]
        h = _swish(y)

    wm_ref, bm_ref, wv_ref, bv_ref = refs[idx:idx + 4]; idx += 4
    maxlv_ref, minlv_ref = refs[idx:idx + 2]; idx += 2
    mean_ref, var_ref = refs[idx], refs[idx + 1]

    mean = jnp.dot(h, wm_ref[0], preferred_element_type=jnp.float32) + bm_ref[0]
    raw = jnp.dot(h, wv_ref[0], preferred_element_type=jnp.float32) + bv_ref[0]

    maxlv = maxlv_ref[...]   # (1, D_pad) -> broadcasts over rows
    minlv = minlv_ref[...]
    lv = maxlv - _softplus(maxlv - raw)
    lv = minlv + _softplus(lv - minlv)
    if not ret_log_var:
        lv = jnp.exp(lv)

    mean_ref[0] = mean.astype(mean_ref.dtype)
    var_ref[0] = lv.astype(var_ref.dtype)


def ensemble_model_forward(x, fc_params, max_logvar, min_logvar, output_dim,
                           ret_log_var=False, row_tile=2048):
    """Fused forward.

    x:          (E, N, state+action)
    fc_params:  list of (weight (E, in, out), bias (E, out)) for nn1..nn5
    max_logvar, min_logvar: (1, output_dim)
    returns:    mean (E, N, output_dim), var-or-logvar (E, N, output_dim)
    """
    E, N, IN = x.shape
    D = output_dim
    D_pad = _round_up(D, 128)

    hidden_params = fc_params[:-1]
    num_hidden = len(hidden_params)
    w5, b5 = fc_params[-1]
    H = w5.shape[1]

    # Split nn5 into lane-aligned mean / raw-logvar heads, pad each to D_pad lanes.
    pad_d = D_pad - D
    wm = jnp.pad(w5[:, :, :D], ((0, 0), (0, 0), (0, pad_d)))
    wv = jnp.pad(w5[:, :, D:2 * D], ((0, 0), (0, 0), (0, pad_d)))
    bm = jnp.pad(b5[:, :D], ((0, 0), (0, pad_d))).reshape(E, 1, D_pad)
    bv = jnp.pad(b5[:, D:2 * D], ((0, 0), (0, pad_d))).reshape(E, 1, D_pad)
    maxlv = jnp.pad(max_logvar, ((0, 0), (0, pad_d)))
    minlv = jnp.pad(min_logvar, ((0, 0), (0, pad_d)))

    # Row tile: as few tiles as possible (<= row_tile rows each), multiple of 8,
    # with padding < one tile.
    n_tiles = max(1, pl.cdiv(N, row_tile))
    TM = _round_up(pl.cdiv(N, n_tiles), 8)
    N_pad = _round_up(N, TM)
    if N_pad != N:
        x = jnp.pad(x, ((0, 0), (0, N_pad - N), (0, 0)))

    grid = (E, N_pad // TM)

    # --- specs -------------------------------------------------------------
    in_specs = [pl.BlockSpec((1, TM, IN), lambda e, m: (e, m, 0))]
    operands = [x]
    for (w, b) in hidden_params:
        din, dout = w.shape[1], w.shape[2]
        in_specs.append(pl.BlockSpec((1, din, dout), lambda e, m: (e, 0, 0)))
        in_specs.append(pl.BlockSpec((1, 1, dout), lambda e, m: (e, 0, 0)))
        operands.append(w)
        operands.append(b.reshape(E, 1, dout))
    for arr in (wm, bm, wv, bv):
        in_specs.append(pl.BlockSpec(arr.shape[1:] if False else (1,) + arr.shape[1:],
                                     lambda e, m: (e, 0, 0)))
        operands.append(arr)
    for arr in (maxlv, minlv):
        in_specs.append(pl.BlockSpec((1, D_pad), lambda e, m: (0, 0)))
        operands.append(arr)

    out_specs = [
        pl.BlockSpec((1, TM, D_pad), lambda e, m: (e, m, 0)),
        pl.BlockSpec((1, TM, D_pad), lambda e, m: (e, m, 0)),
    ]
    out_shape = (
        jax.ShapeDtypeStruct((E, N_pad, D_pad), x.dtype),
        jax.ShapeDtypeStruct((E, N_pad, D_pad), x.dtype),
    )

    # --- cost estimate (memory-bound) ---------------------------------------
    itemsize = jnp.dtype(x.dtype).itemsize
    flops = 0
    hidden_units = 0
    weight_elems = 0
    for (w, _) in hidden_params:
        flops += 2 * E * N_pad * w.shape[1] * w.shape[2]
        hidden_units += E * N_pad * w.shape[2]
        weight_elems += w.size + E * w.shape[2]
    flops += 2 * 2 * E * N_pad * H * D_pad
    weight_elems += wm.size + wv.size + bm.size + bv.size
    bytes_accessed = itemsize * (E * N_pad * IN + weight_elems + 2 * E * N_pad * D_pad)
    transcendentals = hidden_units + 3 * E * N_pad * D_pad

    kernel = functools.partial(_ensemble_model_kernel,
                               num_hidden=num_hidden,
                               ret_log_var=ret_log_var)

    mean_pad, var_pad = pl.pallas_call(
        kernel,
        out_shape=out_shape,
        grid_spec=pltpu.PrefetchScalarGridSpec(
            num_scalar_prefetch=0,
            grid=grid,
            in_specs=in_specs,
            out_specs=out_specs,
        ),
        compiler_params=pltpu.CompilerParams(
            # No reduction axis: every output block index varies with (e, m),
            # so both axes can be sharded across v7x's two TensorCores.
            dimension_semantics=("parallel", "parallel"),
            # Explicit budget: safe on v5e/v6e (128 MiB phys) and v7x (64 MiB phys).
            vmem_limit_bytes=32 * 1024 * 1024,
        ),
        cost_estimate=pl.CostEstimate(
            flops=int(flops),
            transcendentals=int(transcendentals),
            bytes_accessed=int(bytes_accessed),
        ),
    )(*operands)

    return mean_pad[:, :N, :D], var_pad[:, :N, :D]


# ---------------------------------------------------------------------------
# Pure-JAX reference (mirrors the PyTorch forward exactly)
# ---------------------------------------------------------------------------
def ensemble_model_reference(x, fc_params, max_logvar, min_logvar, output_dim,
                             ret_log_var=False):
    h = x
    for w, b in fc_params[:-1]:
        y = jnp.einsum("enk,eko->eno", h, w,
                       precision=jax.lax.Precision.HIGHEST) + b[:, None, :]
        h = y * (1.0 / (1.0 + jnp.exp(-y)))
    w5, b5 = fc_params[-1]
    o = jnp.einsum("enk,eko->eno", h, w5,
                   precision=jax.lax.Precision.HIGHEST) + b5[:, None, :]
    mean = o[:, :, :output_dim]
    raw = o[:, :, output_dim:]
    lv = max_logvar - _softplus(max_logvar - raw)
    lv = min_logvar + _softplus(lv - min_logvar)
    return mean, (lv if ret_log_var else jnp.exp(lv))


if __name__ == "__main__":
    # Small shapes consistent with EnsembleModel's forward.
    E = 3                # ensemble_size
    N = 16               # batch rows per ensemble member
    state_size, action_size, reward_size = 8, 4, 1
    hidden = 32
    in_dim = state_size + action_size
    output_dim = state_size + reward_size

    key = jax.random.PRNGKey(0)

    def trunc_normal(k, shape, std):
        return std * jax.random.truncated_normal(k, -2.0, 2.0, shape, dtype=jnp.float32)

    # init_weights: truncated-normal weights (std = 1 / (2*sqrt(in))), zero bias.
    layer_dims = [(in_dim, hidden), (hidden, hidden), (hidden, hidden),
                  (hidden, hidden), (hidden, 2 * output_dim)]
    fc_params = []
    keys = jax.random.split(key, len(layer_dims) + 1)
    for k, (din, dout) in zip(keys[:-1], layer_dims):
        w = trunc_normal(k, (E, din, dout), std=1.0 / (2.0 * (din ** 0.5)))
        b = jnp.zeros((E, dout), dtype=jnp.float32)
        fc_params.append((w, b))

    max_logvar = jnp.ones((1, output_dim), dtype=jnp.float32) / 2.0
    min_logvar = -jnp.ones((1, output_dim), dtype=jnp.float32) * 10.0

    x = jax.random.normal(keys[-1], (E, N, in_dim), dtype=jnp.float32)

    # ret_log_var = False path (returns variance)
    mean, var = ensemble_model_forward(x, fc_params, max_logvar, min_logvar,
                                       output_dim, ret_log_var=False)
    mean = jax.block_until_ready(mean)
    var = jax.block_until_ready(var)

    ref_mean, ref_var = ensemble_model_reference(x, fc_params, max_logvar,
                                                 min_logvar, output_dim,
                                                 ret_log_var=False)
    assert mean.shape == (E, N, output_dim)
    assert var.shape == (E, N, output_dim)
    assert jnp.allclose(mean, ref_mean, atol=1e-4, rtol=1e-4)
    assert jnp.allclose(var, ref_var, atol=1e-4, rtol=1e-4)

    # ret_log_var = True path (returns logvar)
    mean2, logvar = ensemble_model_forward(x, fc_params, max_logvar, min_logvar,
                                           output_dim, ret_log_var=True)
    logvar = jax.block_until_ready(logvar)
    ref_mean2, ref_logvar = ensemble_model_reference(x, fc_params, max_logvar,
                                                     min_logvar, output_dim,
                                                     ret_log_var=True)
    assert jnp.allclose(mean2, ref_mean2, atol=1e-4, rtol=1e-4)
    assert jnp.allclose(logvar, ref_logvar, atol=1e-4, rtol=1e-4)

    print("KERNEL_OK")
</pallas_src>

<mosaic_0001>
module attributes {stable_mosaic.version = 11 : i64} {
  func.func @_ensemble_model_kernel(%arg0: i32, %arg1: i32, %arg2: memref<1x16x12xf32, #tpu.memory_space<vmem>>, %arg3: memref<1x12x32xf32, #tpu.memory_space<vmem>>, %arg4: memref<1x1x32xf32, #tpu.memory_space<vmem>>, %arg5: memref<1x32x32xf32, #tpu.memory_space<vmem>>, %arg6: memref<1x1x32xf32, #tpu.memory_space<vmem>>, %arg7: memref<1x32x32xf32, #tpu.memory_space<vmem>>, %arg8: memref<1x1x32xf32, #tpu.memory_space<vmem>>, %arg9: memref<1x32x32xf32, #tpu.memory_space<vmem>>, %arg10: memref<1x1x32xf32, #tpu.memory_space<vmem>>, %arg11: memref<1x32x128xf32, #tpu.memory_space<vmem>>, %arg12: memref<1x1x128xf32, #tpu.memory_space<vmem>>, %arg13: memref<1x32x128xf32, #tpu.memory_space<vmem>>, %arg14: memref<1x1x128xf32, #tpu.memory_space<vmem>>, %arg15: memref<1x128xf32, #tpu.memory_space<vmem>>, %arg16: memref<1x128xf32, #tpu.memory_space<vmem>>, %arg17: memref<1x16x128xf32, #tpu.memory_space<vmem>>, %arg18: memref<1x16x128xf32, #tpu.memory_space<vmem>>) attributes {dimension_semantics = [#tpu.dimension_semantics<parallel>, #tpu.dimension_semantics<parallel>], iteration_bounds = array<i64: 3, 1>, scalar_prefetch = 0 : i64, scratch_operands = 0 : i64, tpu.core_type = #tpu.core_type<tc>, window_params = [{transform_indices = @transform_0, window_bounds = array<i64: 1, 16, 12>}, {transform_indices = @transform_1, window_bounds = array<i64: 1, 12, 32>}, {transform_indices = @transform_2, window_bounds = array<i64: 1, 1, 32>}, {transform_indices = @transform_3, window_bounds = array<i64: 1, 32, 32>}, {transform_indices = @transform_4, window_bounds = array<i64: 1, 1, 32>}, {transform_indices = @transform_5, window_bounds = array<i64: 1, 32, 32>}, {transform_indices = @transform_6, window_bounds = array<i64: 1, 1, 32>}, {transform_indices = @transform_7, window_bounds = array<i64: 1, 32, 32>}, {transform_indices = @transform_8, window_bounds = array<i64: 1, 1, 32>}, {transform_indices = @transform_9, window_bounds = array<i64: 1, 32, 128>}, {transform_indices = @transform_10, window_bounds = array<i64: 1, 1, 128>}, {transform_indices = @transform_11, window_bounds = array<i64: 1, 32, 128>}, {transform_indices = @transform_12, window_bounds = array<i64: 1, 1, 128>}, {pipeline_mode = #tpu.pipeline_mode<synchronous>, transform_indices = @transform_13, window_bounds = array<i64: 1, 128>}, {pipeline_mode = #tpu.pipeline_mode<synchronous>, transform_indices = @transform_14, window_bounds = array<i64: 1, 128>}, {transform_indices = @transform_15, window_bounds = array<i64: 1, 16, 128>}, {transform_indices = @transform_16, window_bounds = array<i64: 1, 16, 128>}]} {
    %c0 = arith.constant 0 : index
    %c0_0 = arith.constant 0 : index
    %c0_1 = arith.constant 0 : index
    %0 = vector.load %arg2[%c0, %c0_0, %c0_1] : memref<1x16x12xf32, #tpu.memory_space<vmem>>, vector<1x16x12xf32>
    %1 = vector.shape_cast %0 : vector<1x16x12xf32> to vector<16x12xf32>
    %c0_2 = arith.constant 0 : index
    %c0_3 = arith.constant 0 : index
    %c0_4 = arith.constant 0 : index
    %2 = vector.load %arg3[%c0_2, %c0_3, %c0_4] : memref<1x12x32xf32, #tpu.memory_space<vmem>>, vector<1x12x32xf32>
    %3 = vector.shape_cast %2 : vector<1x12x32xf32> to vector<12x32xf32>
    %cst = arith.constant dense<0.000000e+00> : vector<16x32xf32>
    %4 = tpu.matmul %1, %3, %cst {dimension_numbers = #tpu.dot_dimension_numbers<[1], [0], [0], [1], [0, 0, 1, 1], [], []>} : vector<16x12xf32>, vector<12x32xf32>, vector<16x32xf32> -> vector<16x32xf32>
    %c0_5 = arith.constant 0 : index
    %c0_6 = arith.constant 0 : index
    %c0_7 = arith.constant 0 : index
    %5 = vector.load %arg4[%c0_5, %c0_6, %c0_7] : memref<1x1x32xf32, #tpu.memory_space<vmem>>, vector<1x1x32xf32>
    %6 = vector.shape_cast %5 : vector<1x1x32xf32> to vector<1x32xf32>
    %7 = vector.broadcast %6 : vector<1x32xf32> to vector<16x32xf32>
    %8 = arith.addf %4, %7 : vector<16x32xf32>
    %cst_8 = arith.constant 0.000000e+00 : f32
    %9 = vector.broadcast %cst_8 : f32 to vector<16x32xf32>
    %10 = arith.subf %9, %8 : vector<16x32xf32>
    %11 = math.exp %10 : vector<16x32xf32>
    %cst_9 = arith.constant 1.000000e+00 : f32
    %12 = vector.broadcast %cst_9 : f32 to vector<16x32xf32>
    %13 = arith.addf %12, %11 : vector<16x32xf32>
    %cst_10 = arith.constant 1.000000e+00 : f32
    %14 = vector.broadcast %cst_10 : f32 to vector<16x32xf32>
    %15 = arith.divf %14, %13 : vector<16x32xf32>
    %16 = arith.mulf %8, %15 : vector<16x32xf32>
    %c0_11 = arith.constant 0 : index
    %c0_12 = arith.constant 0 : index
    %c0_13 = arith.constant 0 : index
    %17 = vector.load %arg5[%c0_11, %c0_12, %c0_13] : memref<1x32x32xf32, #tpu.memory_space<vmem>>, vector<1x32x32xf32>
    %18 = vector.shape_cast %17 : vector<1x32x32xf32> to vector<32x32xf32>
    %cst_14 = arith.constant dense<0.000000e+00> : vector<16x32xf32>
    %19 = tpu.matmul %16, %18, %cst_14 {dimension_numbers = #tpu.dot_dimension_numbers<[1], [0], [0], [1], [0, 0, 1, 1], [], []>} : vector<16x32xf32>, vector<32x32xf32>, vector<16x32xf32> -> vector<16x32xf32>
    %c0_15 = arith.constant 0 : index
    %c0_16 = arith.constant 0 : index
    %c0_17 = arith.constant 0 : index
    %20 = vector.load %arg6[%c0_15, %c0_16, %c0_17] : memref<1x1x32xf32, #tpu.memory_space<vmem>>, vector<1x1x32xf32>
    %21 = vector.shape_cast %20 : vector<1x1x32xf32> to vector<1x32xf32>
    %22 = vector.broadcast %21 : vector<1x32xf32> to vector<16x32xf32>
    %23 = arith.addf %19, %22 : vector<16x32xf32>
    %cst_18 = arith.constant 0.000000e+00 : f32
    %24 = vector.broadcast %cst_18 : f32 to vector<16x32xf32>
    %25 = arith.subf %24, %23 : vector<16x32xf32>
    %26 = math.exp %25 : vector<16x32xf32>
    %cst_19 = arith.constant 1.000000e+00 : f32
    %27 = vector.broadcast %cst_19 : f32 to vector<16x32xf32>
    %28 = arith.addf %27, %26 : vector<16x32xf32>
    %cst_20 = arith.constant 1.000000e+00 : f32
    %29 = vector.broadcast %cst_20 : f32 to vector<16x32xf32>
    %30 = arith.divf %29, %28 : vector<16x32xf32>
    %31 = arith.mulf %23, %30 : vector<16x32xf32>
    %c0_21 = arith.constant 0 : index
    %c0_22 = arith.constant 0 : index
    %c0_23 = arith.constant 0 : index
    %32 = vector.load %arg7[%c0_21, %c0_22, %c0_23] : memref<1x32x32xf32, #tpu.memory_space<vmem>>, vector<1x32x32xf32>
    %33 = vector.shape_cast %32 : vector<1x32x32xf32> to vector<32x32xf32>
    %cst_24 = arith.constant dense<0.000000e+00> : vector<16x32xf32>
    %34 = tpu.matmul %31, %33, %cst_24 {dimension_numbers = #tpu.dot_dimension_numbers<[1], [0], [0], [1], [0, 0, 1, 1], [], []>} : vector<16x32xf32>, vector<32x32xf32>, vector<16x32xf32> -> vector<16x32xf32>
    %c0_25 = arith.constant 0 : index
    %c0_26 = arith.constant 0 : index
    %c0_27 = arith.constant 0 : index
    %35 = vector.load %arg8[%c0_25, %c0_26, %c0_27] : memref<1x1x32xf32, #tpu.memory_space<vmem>>, vector<1x1x32xf32>
    %36 = vector.shape_cast %35 : vector<1x1x32xf32> to vector<1x32xf32>
    %37 = vector.broadcast %36 : vector<1x32xf32> to vector<16x32xf32>
    %38 = arith.addf %34, %37 : vector<16x32xf32>
    %cst_28 = arith.constant 0.000000e+00 : f32
    %39 = vector.broadcast %cst_28 : f32 to vector<16x32xf32>
    %40 = arith.subf %39, %38 : vector<16x32xf32>
    %41 = math.exp %40 : vector<16x32xf32>
    %cst_29 = arith.constant 1.000000e+00 : f32
    %42 = vector.broadcast %cst_29 : f32 to vector<16x32xf32>
    %43 = arith.addf %42, %41 : vector<16x32xf32>
    %cst_30 = arith.constant 1.000000e+00 : f32
    %44 = vector.broadcast %cst_30 : f32 to vector<16x32xf32>
    %45 = arith.divf %44, %43 : vector<16x32xf32>
    %46 = arith.mulf %38, %45 : vector<16x32xf32>
    %c0_31 = arith.constant 0 : index
    %c0_32 = arith.constant 0 : index
    %c0_33 = arith.constant 0 : index
    %47 = vector.load %arg9[%c0_31, %c0_32, %c0_33] : memref<1x32x32xf32, #tpu.memory_space<vmem>>, vector<1x32x32xf32>
    %48 = vector.shape_cast %47 : vector<1x32x32xf32> to vector<32x32xf32>
    %cst_34 = arith.constant dense<0.000000e+00> : vector<16x32xf32>
    %49 = tpu.matmul %46, %48, %cst_34 {dimension_numbers = #tpu.dot_dimension_numbers<[1], [0], [0], [1], [0, 0, 1, 1], [], []>} : vector<16x32xf32>, vector<32x32xf32>, vector<16x32xf32> -> vector<16x32xf32>
    %c0_35 = arith.constant 0 : index
    %c0_36 = arith.constant 0 : index
    %c0_37 = arith.constant 0 : index
    %50 = vector.load %arg10[%c0_35, %c0_36, %c0_37] : memref<1x1x32xf32, #tpu.memory_space<vmem>>, vector<1x1x32xf32>
    %51 = vector.shape_cast %50 : vector<1x1x32xf32> to vector<1x32xf32>
    %52 = vector.broadcast %51 : vector<1x32xf32> to vector<16x32xf32>
    %53 = arith.addf %49, %52 : vector<16x32xf32>
    %cst_38 = arith.constant 0.000000e+00 : f32
    %54 = vector.broadcast %cst_38 : f32 to vector<16x32xf32>
    %55 = arith.subf %54, %53 : vector<16x32xf32>
    %56 = math.exp %55 : vector<16x32xf32>
    %cst_39 = arith.constant 1.000000e+00 : f32
    %57 = vector.broadcast %cst_39 : f32 to vector<16x32xf32>
    %58 = arith.addf %57, %56 : vector<16x32xf32>
    %cst_40 = arith.constant 1.000000e+00 : f32
    %59 = vector.broadcast %cst_40 : f32 to vector<16x32xf32>
    %60 = arith.divf %59, %58 : vector<16x32xf32>
    %61 = arith.mulf %53, %60 : vector<16x32xf32>
    %c0_41 = arith.constant 0 : index
    %c0_42 = arith.constant 0 : index
    %c0_43 = arith.constant 0 : index
    %62 = vector.load %arg11[%c0_41, %c0_42, %c0_43] : memref<1x32x128xf32, #tpu.memory_space<vmem>>, vector<1x32x128xf32>
    %63 = vector.shape_cast %62 : vector<1x32x128xf32> to vector<32x128xf32>
    %cst_44 = arith.constant dense<0.000000e+00> : vector<16x128xf32>
    %64 = tpu.matmul %61, %63, %cst_44 {dimension_numbers = #tpu.dot_dimension_numbers<[1], [0], [0], [1], [0, 0, 1, 1], [], []>} : vector<16x32xf32>, vector<32x128xf32>, vector<16x128xf32> -> vector<16x128xf32>
    %c0_45 = arith.constant 0 : index
    %c0_46 = arith.constant 0 : index
    %c0_47 = arith.constant 0 : index
    %65 = vector.load %arg12[%c0_45, %c0_46, %c0_47] : memref<1x1x128xf32, #tpu.memory_space<vmem>>, vector<1x1x128xf32>
    %66 = vector.shape_cast %65 : vector<1x1x128xf32> to vector<1x128xf32>
    %67 = vector.broadcast %66 : vector<1x128xf32> to vector<16x128xf32>
    %68 = arith.addf %64, %67 : vector<16x128xf32>
    %c0_48 = arith.constant 0 : index
    %c0_49 = arith.constant 0 : index
    %c0_50 = arith.constant 0 : index
    %69 = vector.load %arg13[%c0_48, %c0_49, %c0_50] : memref<1x32x128xf32, #tpu.memory_space<vmem>>, vector<1x32x128xf32>
    %70 = vector.shape_cast %69 : vector<1x32x128xf32> to vector<32x128xf32>
    %cst_51 = arith.constant dense<0.000000e+00> : vector<16x128xf32>
    %71 = tpu.matmul %61, %70, %cst_51 {dimension_numbers = #tpu.dot_dimension_numbers<[1], [0], [0], [1], [0, 0, 1, 1], [], []>} : vector<16x32xf32>, vector<32x128xf32>, vector<16x128xf32> -> vector<16x128xf32>
    %c0_52 = arith.constant 0 : index
    %c0_53 = arith.constant 0 : index
    %c0_54 = arith.constant 0 : index
    %72 = vector.load %arg14[%c0_52, %c0_53, %c0_54] : memref<1x1x128xf32, #tpu.memory_space<vmem>>, vector<1x1x128xf32>
    %73 = vector.shape_cast %72 : vector<1x1x128xf32> to vector<1x128xf32>
    %74 = vector.broadcast %73 : vector<1x128xf32> to vector<16x128xf32>
    %75 = arith.addf %71, %74 : vector<16x128xf32>
    %c0_55 = arith.constant 0 : index
    %c0_56 = arith.constant 0 : index
    %76 = vector.load %arg15[%c0_55, %c0_56] : memref<1x128xf32, #tpu.memory_space<vmem>>, vector<1x128xf32>
    %c0_57 = arith.constant 0 : index
    %c0_58 = arith.constant 0 : index
    %77 = vector.load %arg16[%c0_57, %c0_58] : memref<1x128xf32, #tpu.memory_space<vmem>>, vector<1x128xf32>
    %78 = vector.broadcast %76 : vector<1x128xf32> to vector<16x128xf32>
    %79 = arith.subf %78, %75 : vector<16x128xf32>
    %cst_59 = arith.constant 0.000000e+00 : f32
    %80 = vector.broadcast %cst_59 : f32 to vector<16x128xf32>
    %81 = arith.maximumf %79, %80 : vector<16x128xf32>
    %82 = math.absf %79 : vector<16x128xf32>
    %cst_60 = arith.constant 0.000000e+00 : f32
    %83 = vector.broadcast %cst_60 : f32 to vector<16x128xf32>
    %84 = arith.subf %83, %82 : vector<16x128xf32>
    %85 = math.exp %84 : vector<16x128xf32>
    %cst_61 = arith.constant 1.000000e+00 : f32
    %86 = vector.broadcast %cst_61 : f32 to vector<16x128xf32>
    %87 = arith.addf %86, %85 : vector<16x128xf32>
    %88 = math.log %87 : vector<16x128xf32>
    %89 = arith.addf %81, %88 : vector<16x128xf32>
    %90 = vector.broadcast %76 : vector<1x128xf32> to vector<16x128xf32>
    %91 = arith.subf %90, %89 : vector<16x128xf32>
    %92 = vector.broadcast %77 : vector<1x128xf32> to vector<16x128xf32>
    %93 = arith.subf %91, %92 : vector<16x128xf32>
    %cst_62 = arith.constant 0.000000e+00 : f32
    %94 = vector.broadcast %cst_62 : f32 to vector<16x128xf32>
    %95 = arith.maximumf %93, %94 : vector<16x128xf32>
    %96 = math.absf %93 : vector<16x128xf32>
    %cst_63 = arith.constant 0.000000e+00 : f32
    %97 = vector.broadcast %cst_63 : f32 to vector<16x128xf32>
    %98 = arith.subf %97, %96 : vector<16x128xf32>
    %99 = math.exp %98 : vector<16x128xf32>
    %cst_64 = arith.constant 1.000000e+00 : f32
    %100 = vector.broadcast %cst_64 : f32 to vector<16x128xf32>
    %101 = arith.addf %100, %99 : vector<16x128xf32>
    %102 = math.log %101 : vector<16x128xf32>
    %103 = arith.addf %95, %102 : vector<16x128xf32>
    %104 = vector.broadcast %77 : vector<1x128xf32> to vector<16x128xf32>
    %105 = arith.addf %104, %103 : vector<16x128xf32>
    %106 = math.exp %105 : vector<16x128xf32>
    %c0_65 = arith.constant 0 : index
    %c0_66 = arith.constant 0 : index
    %c0_67 = arith.constant 0 : index
    %107 = vector.load %arg17[%c0_65, %c0_66, %c0_67] : memref<1x16x128xf32, #tpu.memory_space<vmem>>, vector<1x16x128xf32>
    %108 = vector.shape_cast %107 : vector<1x16x128xf32> to vector<16x128xf32>
    %109 = vector.shape_cast %68 : vector<16x128xf32> to vector<1x16x128xf32>
    tpu.vector_store %arg17[%c0_65, %c0_66, %c0_67], %109 {strides = array<i32>} : memref<1x16x128xf32, #tpu.memory_space<vmem>>, vector<1x16x128xf32>,
    %c0_68 = arith.constant 0 : index
    %c0_69 = arith.constant 0 : index
    %c0_70 = arith.constant 0 : index
    %110 = vector.load %arg18[%c0_68, %c0_69, %c0_70] : memref<1x16x128xf32, #tpu.memory_space<vmem>>, vector<1x16x128xf32>
    %111 = vector.shape_cast %110 : vector<1x16x128xf32> to vector<16x128xf32>
    %112 = vector.shape_cast %106 : vector<16x128xf32> to vector<1x16x128xf32>
    tpu.vector_store %arg18[%c0_68, %c0_69, %c0_70], %112 {strides = array<i32>} : memref<1x16x128xf32, #tpu.memory_space<vmem>>, vector<1x16x128xf32>,
    return
  }
  func.func @transform_0(%arg0: i32, %arg1: i32) -> (i32, i32, i32) {
    %c0_i32 = arith.constant 0 : i32
    %c0_i32_0 = arith.constant 0 : i32
    return %arg0, %arg1, %c0_i32 : i32, i32, i32
  }
  func.func @transform_1(%arg0: i32, %arg1: i32) -> (i32, i32, i32) {
    %c0_i32 = arith.constant 0 : i32
    %c0_i32_0 = arith.constant 0 : i32
    %c0_i32_1 = arith.constant 0 : i32
    return %arg0, %c0_i32, %c0_i32_0 : i32, i32, i32
  }
  func.func @transform_2(%arg0: i32, %arg1: i32) -> (i32, i32, i32) {
    %c0_i32 = arith.constant 0 : i32
    %c0_i32_0 = arith.constant 0 : i32
    %c0_i32_1 = arith.constant 0 : i32
    return %arg0, %c0_i32, %c0_i32_0 : i32, i32, i32
  }
  func.func @transform_3(%arg0: i32, %arg1: i32) -> (i32, i32, i32) {
    %c0_i32 = arith.constant 0 : i32
    %c0_i32_0 = arith.constant 0 : i32
    %c0_i32_1 = arith.constant 0 : i32
    return %arg0, %c0_i32, %c0_i32_0 : i32, i32, i32
  }
  func.func @transform_4(%arg0: i32, %arg1: i32) -> (i32, i32, i32) {
    %c0_i32 = arith.constant 0 : i32
    %c0_i32_0 = arith.constant 0 : i32
    %c0_i32_1 = arith.constant 0 : i32
    return %arg0, %c0_i32, %c0_i32_0 : i32, i32, i32
  }
  func.func @transform_5(%arg0: i32, %arg1: i32) -> (i32, i32, i32) {
    %c0_i32 = arith.constant 0 : i32
    %c0_i32_0 = arith.constant 0 : i32
    %c0_i32_1 = arith.constant 0 : i32
    return %arg0, %c0_i32, %c0_i32_0 : i32, i32, i32
  }
  func.func @transform_6(%arg0: i32, %arg1: i32) -> (i32, i32, i32) {
    %c0_i32 = arith.constant 0 : i32
    %c0_i32_0 = arith.constant 0 : i32
    %c0_i32_1 = arith.constant 0 : i32
    return %arg0, %c0_i32, %c0_i32_0 : i32, i32, i32
  }
  func.func @transform_7(%arg0: i32, %arg1: i32) -> (i32, i32, i32) {
    %c0_i32 = arith.constant 0 : i32
    %c0_i32_0 = arith.constant 0 : i32
    %c0_i32_1 = arith.constant 0 : i32
    return %arg0, %c0_i32, %c0_i32_0 : i32, i32, i32
  }
  func.func @transform_8(%arg0: i32, %arg1: i32) -> (i32, i32, i32) {
    %c0_i32 = arith.constant 0 : i32
    %c0_i32_0 = arith.constant 0 : i32
    %c0_i32_1 = arith.constant 0 : i32
    return %arg0, %c0_i32, %c0_i32_0 : i32, i32, i32
  }
  func.func @transform_9(%arg0: i32, %arg1: i32) -> (i32, i32, i32) {
    %c0_i32 = arith.constant 0 : i32
    %c0_i32_0 = arith.constant 0 : i32
    %c0_i32_1 = arith.constant 0 : i32
    return %arg0, %c0_i32, %c0_i32_0 : i32, i32, i32
  }
  func.func @transform_10(%arg0: i32, %arg1: i32) -> (i32, i32, i32) {
    %c0_i32 = arith.constant 0 : i32
    %c0_i32_0 = arith.constant 0 : i32
    %c0_i32_1 = arith.constant 0 : i32
    return %arg0, %c0_i32, %c0_i32_0 : i32, i32, i32
  }
  func.func @transform_11(%arg0: i32, %arg1: i32) -> (i32, i32, i32) {
    %c0_i32 = arith.constant 0 : i32
    %c0_i32_0 = arith.constant 0 : i32
    %c0_i32_1 = arith.constant 0 : i32
    return %arg0, %c0_i32, %c0_i32_0 : i32, i32, i32
  }
  func.func @transform_12(%arg0: i32, %arg1: i32) -> (i32, i32, i32) {
    %c0_i32 = arith.constant 0 : i32
    %c0_i32_0 = arith.constant 0 : i32
    %c0_i32_1 = arith.constant 0 : i32
    return %arg0, %c0_i32, %c0_i32_0 : i32, i32, i32
  }
  func.func @transform_13(%arg0: i32, %arg1: i32) -> (i32, i32) {
    %c0_i32 = arith.constant 0 : i32
    %c0_i32_0 = arith.constant 0 : i32
    %c0_i32_1 = arith.constant 0 : i32
    return %c0_i32, %c0_i32_0 : i32, i32
  }
  func.func @transform_14(%arg0: i32, %arg1: i32) -> (i32, i32) {
    %c0_i32 = arith.constant 0 : i32
    %c0_i32_0 = arith.constant 0 : i32
    %c0_i32_1 = arith.constant 0 : i32
    return %c0_i32, %c0_i32_0 : i32, i32
  }
  func.func @transform_15(%arg0: i32, %arg1: i32) -> (i32, i32, i32) {
    %c0_i32 = arith.constant 0 : i32
    %c0_i32_0 = arith.constant 0 : i32
    return %arg0, %arg1, %c0_i32 : i32, i32, i32
  }
  func.func @transform_16(%arg0: i32, %arg1: i32) -> (i32, i32, i32) {
    %c0_i32 = arith.constant 0 : i32
    %c0_i32_0 = arith.constant 0 : i32
    return %arg0, %arg1, %c0_i32 : i32, i32, i32
  }
}

</mosaic_0001>

<llo_original>
// kernel: tpu_custom_call.1
$region0: #{tpu_custom_call.1}
  #allocation0 [shape = 'u32[]', space=smem, size = 0x4, offset = 0x4, fixed_abs, tag = 'smem constant byte address 0x4 - core index']
  #allocation1 [shape = 'u32[144,128]{1,0:T(1,128)}', space=vmem, size = 0x12000, scoped, tag = 'internal scratch']
  %s0 = inlined_call_operand.hbm [shape: f32[3,16,12], index: 0, kind: input, shape index: {}]
  %s1 = inlined_call_operand.hbm [shape: f32[3,12,32], index: 1, kind: input, shape index: {}]
  %s2 = inlined_call_operand.vmem [shape: f32[3,1,32], index: 2, kind: input, shape index: {}]
  %s3 = inlined_call_operand.hbm [shape: f32[3,32,32], index: 3, kind: input, shape index: {}]
  %s4 = inlined_call_operand.vmem [shape: f32[3,1,32], index: 4, kind: input, shape index: {}]
  %s5 = inlined_call_operand.hbm [shape: f32[3,32,32], index: 5, kind: input, shape index: {}]
  %s6 = inlined_call_operand.vmem [shape: f32[3,1,32], index: 6, kind: input, shape index: {}]
  %s7 = inlined_call_operand.hbm [shape: f32[3,32,32], index: 7, kind: input, shape index: {}]
  %s8 = inlined_call_operand.vmem [shape: f32[3,1,32], index: 8, kind: input, shape index: {}]
  %s9 = inlined_call_operand.hbm [shape: f32[3,32,128], index: 9, kind: input, shape index: {}]
  %s10 = inlined_call_operand.vmem [shape: f32[3,1,128], index: 10, kind: input, shape index: {}]
  %s11 = inlined_call_operand.hbm [shape: f32[3,32,128], index: 11, kind: input, shape index: {}]
  %s12 = inlined_call_operand.vmem [shape: f32[3,1,128], index: 12, kind: input, shape index: {}]
  %s13 = inlined_call_operand.vmem [shape: f32[1,128], index: 13, kind: input, shape index: {}]
  %s14 = inlined_call_operand.vmem [shape: f32[1,128], index: 14, kind: input, shape index: {}]
  %s15 = inlined_call_operand.hbm [shape: f32[3,16,128], index: 15, kind: output, shape index: {0}]
  %s16 = inlined_call_operand.hbm [shape: f32[3,16,128], index: 16, kind: output, shape index: {1}]
  %17 = xla_tuple %s15, %s16
  %s18 = sld [smem:[#allocation0]]
  $region129: #{tpu_custom_call.1} parent=0
    _
  %s20 = ssub.s32 1, %s18
  %s21 = scalar_select 0, %s20, %s18
  $region1: #{tpu_custom_call.1} parent=0
    #allocation2 [shape = 'u8[16384]{0}', space=vmem, size = 0x4000, scoped, tag = 'input window, operand 0']
    #allocation3 [shape = 's32[2]{0}', space=sflag, size = 0x8, scoped, tag = 'scoped memory for tpu_custom_call.1']
    #allocation4 [shape = 's32[2]{0}', space=sflag, size = 0x8, scoped, tag = 'scoped memory for tpu_custom_call.1']
    #allocation5 [shape = 'u8[16384]{0}', space=vmem, size = 0x4000, scoped, tag = 'input window, operand 1']
    #allocation6 [shape = 's32[2]{0}', space=sflag, size = 0x8, scoped, tag = 'scoped memory for tpu_custom_call.1']
    #allocation7 [shape = 'u8[32768]{0}', space=vmem, size = 0x8000, scoped, tag = 'input window, operand 3']
    #allocation8 [shape = 'u8[32768]{0}', space=vmem, size = 0x8000, scoped, tag = 'input window, operand 5']
    #allocation9 [shape = 's32[2]{0}', space=sflag, size = 0x8, scoped, tag = 'scoped memory for tpu_custom_call.1']
    #allocation10 [shape = 'u8[32768]{0}', space=vmem, size = 0x8000, scoped, tag = 'input window, operand 7']
    #allocation11 [shape = 'u8[32768]{0}', space=vmem, size = 0x8000, scoped, tag = 'input window, operand 9']
    #allocation12 [shape = 's32[2]{0}', space=sflag, size = 0x8, scoped, tag = 'scoped memory for tpu_custom_call.1']
    #allocation13 [shape = 'u8[32768]{0}', space=vmem, size = 0x8000, scoped, tag = 'input window, operand 11']
    #allocation14 [shape = 'u8[16384]{0}', space=vmem, size = 0x4000, scoped, tag = 'output window, operand 0']
    #allocation15 [shape = 'u8[16384]{0}', space=vmem, size = 0x4000, scoped, tag = 'output window, operand 1']
    #allocation16 [shape = 's32[2]{0}', space=sflag, size = 0x8, scoped, tag = 'scoped memory for tpu_custom_call.1']
    %22 = vsyncpa [#allocation3], 0
    %s23 = scalar_lea.sflag [#allocation3], 1
    %24 = vsyncpa %s23, 0
    %25 = vsyncpa [#allocation6], 0
    %s26 = scalar_lea.sflag [#allocation6], 1
    %27 = vsyncpa %s26, 0
    %28 = vsyncpa [#allocation9], 0
    %s29 = scalar_lea.sflag [#allocation9], 1
    %30 = vsyncpa %s29, 0
    %31 = vsyncpa [#allocation12], 0
    %s32 = scalar_lea.sflag [#allocation12], 1
    %33 = vsyncpa %s32, 0
    %34 = vsyncpa [#allocation4], 0
    %s35 = scalar_lea.sflag [#allocation4], 1
    %36 = vsyncpa %s35, 0
    %37 = vsyncpa [#allocation16], 0
    %s38 = scalar_lea.sflag [#allocation16], 1
    %39 = vsyncpa %s38, 0
    loop: start=0, step=1, limit=5
    $region2: #{tpu_custom_call.1} parent=1 // loop_pre_header
      _
    $region3: #{tpu_custom_call.1} parent=1 // loop_header
      %s41 = sphi 0, %s45
      %p42 = scmp.ge.s32.totalorder %s41, 5
      %s48 = sphi 0, %s60
      %s49 = sphi 0, %s56
      %s50 = sphi 0, %s48
      %s51 = sphi 0, %s49
      %s52 = sphi 0, %s50
      %s53 = sphi 0, %s51
      %s65 = sphi 0, %s67
      %s68 = sphi 0, %s65
      %s69 = sphi 0, %s68
      %s85 = sphi 0, %s69
      %s91 = sphi 0, %s93
      %s94 = sphi 0, %s91
      %s95 = sphi 0, %s94
      %s111 = sphi 0, %s95
      %s117 = sphi 0, %s119
      %s120 = sphi 0, %s117
      %s121 = sphi 0, %s120
      %s137 = sphi 0, %s121
      %s143 = sphi 0, %s145
      %s146 = sphi 0, %s143
      %s147 = sphi 0, %s146
      %s163 = sphi 0, %s147
      %s169 = sphi 0, %s171
      %s172 = sphi 0, %s169
      %s173 = sphi 0, %s172
      %s189 = sphi 0, %s173
      %s195 = sphi 0, %s197
      %s198 = sphi 0, %s195
      %s199 = sphi 0, %s198
      %s215 = sphi 0, %s199
      %s221 = sphi 0, %s223
      %s224 = sphi 0, %s221
      %s225 = sphi 0, %s224
      %s241 = sphi 0, %s225
      %s247 = sphi 0, %s249
      %s250 = sphi 0, %s247
      %s251 = sphi 0, %s250
      %s267 = sphi 0, %s251
      %s273 = sphi 0, %s275
      %s276 = sphi 0, %s273
      %s277 = sphi 0, %s276
      %s293 = sphi 0, %s277
      %s299 = sphi 0, %s301
      %s302 = sphi 0, %s299
      %s303 = sphi 0, %s302
      %s319 = sphi 0, %s303
      %s325 = sphi 0, %s327
      %s328 = sphi 0, %s325
      %s329 = sphi 0, %s328
      %s345 = sphi 0, %s329
      %s351 = sphi 0, %s353
      %s354 = sphi 0, %s351
      %s355 = sphi 0, %s354
      %s371 = sphi 0, %s355
      %s377 = sphi 0, %s379
      %s380 = sphi 0, %s377
      %s381 = sphi 0, %s380
      %s397 = sphi 0, %s381
      %s401 = sphi 0, %s401
      %s403 = sphi 0, %s401
      %s404 = sphi 0, %s403
      %s418 = sphi 0, %s404
      %s422 = sphi 0, %s422
      %s424 = sphi 0, %s422
      %s425 = sphi 0, %s424
      %s439 = sphi 0, %s425
      %s447 = sphi 0, %s449
      %s450 = sphi 0, %s447
      %s451 = sphi 0, %s450
      %s467 = sphi 0, %s451
      %s475 = sphi 0, %s477
      %s478 = sphi 0, %s475
      %s479 = sphi 0, %s478
      %s495 = sphi 0, %s479
    $region4: #{tpu_custom_call.1} parent=1 // loop_header_branch
      %44 = sbr.rel (%p42) target = $region8
    $region5: #{tpu_custom_call.1} parent=1 // loop_body
      %s46 = ssub.s32 %s41, 1
      %s47 = ssub.s32 %s41, 2
      %s54 = sadd.s32 1, %s49
      %p55 = scmp.ge.s32.totalorder %s54, 1
      %s56 = scalar_select %p55, 0, %s54
      %s57 = sadd.s32 1, %s48
      %s58 = scalar_select %p55, %s57, %s48
      %p59 = scmp.ge.s32.totalorder %s58, 3
      %s60 = scalar_select %p59, 0, %s58
      %s61 = ssub.s32 %s48, %s60
      %s62 = ssub.s32 %s49, %s56
      %s63 = sor.u32 %s61, %s62
      %p64 = scmp.eq.s32.totalorder %s63, 0
      %s66 = sadd.s32 %s65, 1
      %s67 = scalar_select %p64, %s65, %s66
      %p70 = pneg %p64
      %p71 = scmp.eq.s32.totalorder %s41, 2
      %p72 = por %p70, %p71
      %p73 = scmp.ne.s32.totalorder %s65, %s68
      %p74 = scmp.eq.s32.totalorder %s41, 0
      %p75 = por %p73, %p74
      %p76 = scmp.ne.s32.totalorder %s65, %s68
      %p77 = scmp.eq.s32.totalorder %s46, 2
      %p78 = por %p76, %p77
      %p79 = scmp.ne.s32.totalorder %s68, %s69
      %p80 = scmp.eq.s32.totalorder %s46, 0
      %p81 = por %p79, %p80
      %p82 = scmp.ne.s32.totalorder %s68, %s69
      %p83 = scmp.eq.s32.totalorder %s47, 2
      %p84 = por %p82, %p83
      %p86 = scmp.ne.s32.totalorder %s69, %s85
      %p87 = scmp.eq.s32.totalorder %s47, 0
      %p88 = por %p86, %p87
      %s89 = ssub.s32 %s48, %s60
      %p90 = scmp.eq.s32.totalorder %s89, 0
      %s92 = sadd.s32 %s91, 1
      %s93 = scalar_select %p90, %s91, %s92
      %p96 = pneg %p90
      %p97 = scmp.eq.s32.totalorder %s41, 2
      %p98 = por %p96, %p97
      %p99 = scmp.ne.s32.totalorder %s91, %s94
      %p100 = scmp.eq.s32.totalorder %s41, 0
      %p101 = por %p99, %p100
      %p102 = scmp.ne.s32.totalorder %s91, %s94
      %p103 = scmp.eq.s32.totalorder %s46, 2
      %p104 = por %p102, %p103
      %p105 = scmp.ne.s32.totalorder %s94, %s95
      %p106 = scmp.eq.s32.totalorder %s46, 0
      %p107 = por %p105, %p106
      %p108 = scmp.ne.s32.totalorder %s94, %s95
      %p109 = scmp.eq.s32.totalorder %s47, 2
      %p110 = por %p108, %p109
      %p112 = scmp.ne.s32.totalorder %s95, %s111
      %p113 = scmp.eq.s32.totalorder %s47, 0
      %p114 = por %p112, %p113
      %s115 = ssub.s32 %s48, %s60
      %p116 = scmp.eq.s32.totalorder %s115, 0
      %s118 = sadd.s32 %s117, 1
      %s119 = scalar_select %p116, %s117, %s118
      %p122 = pneg %p116
      %p123 = scmp.eq.s32.totalorder %s41, 2
      %p124 = por %p122, %p123
      %p125 = scmp.ne.s32.totalorder %s117, %s120
      %p126 = scmp.eq.s32.totalorder %s41, 0
      %p127 = por %p125, %p126
      %p128 = scmp.ne.s32.totalorder %s117, %s120
      %p129 = scmp.eq.s32.totalorder %s46, 2
      %p130 = por %p128, %p129
      %p131 = scmp.ne.s32.totalorder %s120, %s121
      %p132 = scmp.eq.s32.totalorder %s46, 0
      %p133 = por %p131, %p132
      %p134 = scmp.ne.s32.totalorder %s120, %s121
      %p135 = scmp.eq.s32.totalorder %s47, 2
      %p136 = por %p134, %p135
      %p138 = scmp.ne.s32.totalorder %s121, %s137
      %p139 = scmp.eq.s32.totalorder %s47, 0
      %p140 = por %p138, %p139
      %s141 = ssub.s32 %s48, %s60
      %p142 = scmp.eq.s32.totalorder %s141, 0
      %s144 = sadd.s32 %s143, 1
      %s145 = scalar_select %p142, %s143, %s144
      %p148 = pneg %p142
      %p149 = scmp.eq.s32.totalorder %s41, 2
      %p150 = por %p148, %p149
      %p151 = scmp.ne.s32.totalorder %s143, %s146
      %p152 = scmp.eq.s32.totalorder %s41, 0
      %p153 = por %p151, %p152
      %p154 = scmp.ne.s32.totalorder %s143, %s146
      %p155 = scmp.eq.s32.totalorder %s46, 2
      %p156 = por %p154, %p155
      %p157 = scmp.ne.s32.totalorder %s146, %s147
      %p158 = scmp.eq.s32.totalorder %s46, 0
      %p159 = por %p157, %p158
      %p160 = scmp.ne.s32.totalorder %s146, %s147
      %p161 = scmp.eq.s32.totalorder %s47, 2
      %p162 = por %p160, %p161
      %p164 = scmp.ne.s32.totalorder %s147, %s163
      %p165 = scmp.eq.s32.totalorder %s47, 0
      %p166 = por %p164, %p165
      %s167 = ssub.s32 %s48, %s60
      %p168 = scmp.eq.s32.totalorder %s167, 0
      %s170 = sadd.s32 %s169, 1
      %s171 = scalar_select %p168, %s169, %s170
      %p174 = pneg %p168
      %p175 = scmp.eq.s32.totalorder %s41, 2
      %p176 = por %p174, %p175
      %p177 = scmp.ne.s32.totalorder %s169, %s172
      %p178 = scmp.eq.s32.totalorder %s41, 0
      %p179 = por %p177, %p178
      %p180 = scmp.ne.s32.totalorder %s169, %s172
      %p181 = scmp.eq.s32.totalorder %s46, 2
      %p182 = por %p180, %p181
      %p183 = scmp.ne.s32.totalorder %s172, %s173
      %p184 = scmp.eq.s32.totalorder %s46, 0
      %p185 = por %p183, %p184
      %p186 = scmp.ne.s32.totalorder %s172, %s173
      %p187 = scmp.eq.s32.totalorder %s47, 2
      %p188 = por %p186, %p187
      %p190 = scmp.ne.s32.totalorder %s173, %s189
      %p191 = scmp.eq.s32.totalorder %s47, 0
      %p192 = por %p190, %p191
      %s193 = ssub.s32 %s48, %s60
      %p194 = scmp.eq.s32.totalorder %s193, 0
      %s196 = sadd.s32 %s195, 1
      %s197 = scalar_select %p194, %s195, %s196
      %p200 = pneg %p194
      %p201 = scmp.eq.s32.totalorder %s41, 2
      %p202 = por %p200, %p201
      %p203 = scmp.ne.s32.totalorder %s195, %s198
      %p204 = scmp.eq.s32.totalorder %s41, 0
      %p205 = por %p203, %p204
      %p206 = scmp.ne.s32.totalorder %s195, %s198
      %p207 = scmp.eq.s32.totalorder %s46, 2
      %p208 = por %p206, %p207
      %p209 = scmp.ne.s32.totalorder %s198, %s199
      %p210 = scmp.eq.s32.totalorder %s46, 0
      %p211 = por %p209, %p210
      %p212 = scmp.ne.s32.totalorder %s198, %s199
      %p213 = scmp.eq.s32.totalorder %s47, 2
      %p214 = por %p212, %p213
      %p216 = scmp.ne.s32.totalorder %s199, %s215
      %p217 = scmp.eq.s32.totalorder %s47, 0
      %p218 = por %p216, %p217
      %s219 = ssub.s32 %s48, %s60
      %p220 = scmp.eq.s32.totalorder %s219, 0
      %s222 = sadd.s32 %s221, 1
      %s223 = scalar_select %p220, %s221, %s222
      %p226 = pneg %p220
      %p227 = scmp.eq.s32.totalorder %s41, 2
      %p228 = por %p226, %p227
      %p229 = scmp.ne.s32.totalorder %s221, %s224
      %p230 = scmp.eq.s32.totalorder %s41, 0
      %p231 = por %p229, %p230
      %p232 = scmp.ne.s32.totalorder %s221, %s224
      %p233 = scmp.eq.s32.totalorder %s46, 2
      %p234 = por %p232, %p233
      %p235 = scmp.ne.s32.totalorder %s224, %s225
      %p236 = scmp.eq.s32.totalorder %s46, 0
      %p237 = por %p235, %p236
      %p238 = scmp.ne.s32.totalorder %s224, %s225
      %p239 = scmp.eq.s32.totalorder %s47, 2
      %p240 = por %p238, %p239
      %p242 = scmp.ne.s32.totalorder %s225, %s241
      %p243 = scmp.eq.s32.totalorder %s47, 0
      %p244 = por %p242, %p243
      %s245 = ssub.s32 %s48, %s60
      %p246 = scmp.eq.s32.totalorder %s245, 0
      %s248 = sadd.s32 %s247, 1
      %s249 = scalar_select %p246, %s247, %s248
      %p252 = pneg %p246
      %p253 = scmp.eq.s32.totalorder %s41, 2
      %p254 = por %p252, %p253
      %p255 = scmp.ne.s32.totalorder %s247, %s250
      %p256 = scmp.eq.s32.totalorder %s41, 0
      %p257 = por %p255, %p256
      %p258 = scmp.ne.s32.totalorder %s247, %s250
      %p259 = scmp.eq.s32.totalorder %s46, 2
      %p260 = por %p258, %p259
      %p261 = scmp.ne.s32.totalorder %s250, %s251
      %p262 = scmp.eq.s32.totalorder %s46, 0
      %p263 = por %p261, %p262
      %p264 = scmp.ne.s32.totalorder %s250, %s251
      %p265 = scmp.eq.s32.totalorder %s47, 2
      %p266 = por %p264, %p265
      %p268 = scmp.ne.s32.totalorder %s251, %s267
      %p269 = scmp.eq.s32.totalorder %s47, 0
      %p270 = por %p268, %p269
      %s271 = ssub.s32 %s48, %s60
      %p272 = scmp.eq.s32.totalorder %s271, 0
      %s274 = sadd.s32 %s273, 1
      %s275 = scalar_select %p272, %s273, %s274
      %p278 = pneg %p272
      %p279 = scmp.eq.s32.totalorder %s41, 2
      %p280 = por %p278, %p279
      %p281 = scmp.ne.s32.totalorder %s273, %s276
      %p282 = scmp.eq.s32.totalorder %s41, 0
      %p283 = por %p281, %p282
      %p284 = scmp.ne.s32.totalorder %s273, %s276
      %p285 = scmp.eq.s32.totalorder %s46, 2
      %p286 = por %p284, %p285
      %p287 = scmp.ne.s32.totalorder %s276, %s277
      %p288 = scmp.eq.s32.totalorder %s46, 0
      %p289 = por %p287, %p288
      %p290 = scmp.ne.s32.totalorder %s276, %s277
      %p291 = scmp.eq.s32.totalorder %s47, 2
      %p292 = por %p290, %p291
      %p294 = scmp.ne.s32.totalorder %s277, %s293
      %p295 = scmp.eq.s32.totalorder %s47, 0
      %p296 = por %p294, %p295
      %s297 = ssub.s32 %s48, %s60
      %p298 = scmp.eq.s32.totalorder %s297, 0
      %s300 = sadd.s32 %s299, 1
      %s301 = scalar_select %p298, %s299, %s300
      %p304 = pneg %p298
      %p305 = scmp.eq.s32.totalorder %s41, 2
      %p306 = por %p304, %p305
      %p307 = scmp.ne.s32.totalorder %s299, %s302
      %p308 = scmp.eq.s32.totalorder %s41, 0
      %p309 = por %p307, %p308
      %p310 = scmp.ne.s32.totalorder %s299, %s302
      %p311 = scmp.eq.s32.totalorder %s46, 2
      %p312 = por %p310, %p311
      %p313 = scmp.ne.s32.totalorder %s302, %s303
      %p314 = scmp.eq.s32.totalorder %s46, 0
      %p315 = por %p313, %p314
      %p316 = scmp.ne.s32.totalorder %s302, %s303
      %p317 = scmp.eq.s32.totalorder %s47, 2
      %p318 = por %p316, %p317
      %p320 = scmp.ne.s32.totalorder %s303, %s319
      %p321 = scmp.eq.s32.totalorder %s47, 0
      %p322 = por %p320, %p321
      %s323 = ssub.s32 %s48, %s60
      %p324 = scmp.eq.s32.totalorder %s323, 0
      %s326 = sadd.s32 %s325, 1
      %s327 = scalar_select %p324, %s325, %s326
      %p330 = pneg %p324
      %p331 = scmp.eq.s32.totalorder %s41, 2
      %p332 = por %p330, %p331
      %p333 = scmp.ne.s32.totalorder %s325, %s328
      %p334 = scmp.eq.s32.totalorder %s41, 0
      %p335 = por %p333, %p334
      %p336 = scmp.ne.s32.totalorder %s325, %s328
      %p337 = scmp.eq.s32.totalorder %s46, 2
      %p338 = por %p336, %p337
      %p339 = scmp.ne.s32.totalorder %s328, %s329
      %p340 = scmp.eq.s32.totalorder %s46, 0
      %p341 = por %p339, %p340
      %p342 = scmp.ne.s32.totalorder %s328, %s329
      %p343 = scmp.eq.s32.totalorder %s47, 2
      %p344 = por %p342, %p343
      %p346 = scmp.ne.s32.totalorder %s329, %s345
      %p347 = scmp.eq.s32.totalorder %s47, 0
      %p348 = por %p346, %p347
      %s349 = ssub.s32 %s48, %s60
      %p350 = scmp.eq.s32.totalorder %s349, 0
      %s352 = sadd.s32 %s351, 1
      %s353 = scalar_select %p350, %s351, %s352
      %p356 = pneg %p350
      %p357 = scmp.eq.s32.totalorder %s41, 2
      %p358 = por %p356, %p357
      %p359 = scmp.ne.s32.totalorder %s351, %s354
      %p360 = scmp.eq.s32.totalorder %s41, 0
      %p361 = por %p359, %p360
      %p362 = scmp.ne.s32.totalorder %s351, %s354
      %p363 = scmp.eq.s32.totalorder %s46, 2
      %p364 = por %p362, %p363
      %p365 = scmp.ne.s32.totalorder %s354, %s355
      %p366 = scmp.eq.s32.totalorder %s46, 0
      %p367 = por %p365, %p366
      %p368 = scmp.ne.s32.totalorder %s354, %s355
      %p369 = scmp.eq.s32.totalorder %s47, 2
      %p370 = por %p368, %p369
      %p372 = scmp.ne.s32.totalorder %s355, %s371
      %p373 = scmp.eq.s32.totalorder %s47, 0
      %p374 = por %p372, %p373
      %s375 = ssub.s32 %s48, %s60
      %p376 = scmp.eq.s32.totalorder %s375, 0
      %s378 = sadd.s32 %s377, 1
      %s379 = scalar_select %p376, %s377, %s378
      %p382 = pneg %p376
      %p383 = scmp.eq.s32.totalorder %s41, 2
      %p384 = por %p382, %p383
      %p385 = scmp.ne.s32.totalorder %s377, %s380
      %p386 = scmp.eq.s32.totalorder %s41, 0
      %p387 = por %p385, %p386
      %p388 = scmp.ne.s32.totalorder %s377, %s380
      %p389 = scmp.eq.s32.totalorder %s46, 2
      %p390 = por %p388, %p389
      %p391 = scmp.ne.s32.totalorder %s380, %s381
      %p392 = scmp.eq.s32.totalorder %s46, 0
      %p393 = por %p391, %p392
      %p394 = scmp.ne.s32.totalorder %s380, %s381
      %p395 = scmp.eq.s32.totalorder %s47, 2
      %p396 = por %p394, %p395
      %p398 = scmp.ne.s32.totalorder %s381, %s397
      %p399 = scmp.eq.s32.totalorder %s47, 0
      %p400 = por %p398, %p399
      %s402 = sadd.s32 %s401, 1
      %p405 = scmp.eq.s32.totalorder %s41, 2
      %p406 = scmp.ne.s32.totalorder %s401, %s403
      %p407 = scmp.eq.s32.totalorder %s41, 0
      %p408 = por %p406, %p407
      %p409 = scmp.ne.s32.totalorder %s401, %s403
      %p410 = scmp.eq.s32.totalorder %s46, 2
      %p411 = por %p409, %p410
      %p412 = scmp.ne.s32.totalorder %s403, %s404
      %p413 = scmp.eq.s32.totalorder %s46, 0
      %p414 = por %p412, %p413
      %p415 = scmp.ne.s32.totalorder %s403, %s404
      %p416 = scmp.eq.s32.totalorder %s47, 2
      %p417 = por %p415, %p416
      %p419 = scmp.ne.s32.totalorder %s404, %s418
      %p420 = scmp.eq.s32.totalorder %s47, 0
      %p421 = por %p419, %p420
      %s423 = sadd.s32 %s422, 1
      %p426 = scmp.eq.s32.totalorder %s41, 2
      %p427 = scmp.ne.s32.totalorder %s422, %s424
      %p428 = scmp.eq.s32.totalorder %s41, 0
      %p429 = por %p427, %p428
      %p430 = scmp.ne.s32.totalorder %s422, %s424
      %p431 = scmp.eq.s32.totalorder %s46, 2
      %p432 = por %p430, %p431
      %p433 = scmp.ne.s32.totalorder %s424, %s425
      %p434 = scmp.eq.s32.totalorder %s46, 0
      %p435 = por %p433, %p434
      %p436 = scmp.ne.s32.totalorder %s424, %s425
      %p437 = scmp.eq.s32.totalorder %s47, 2
      %p438 = por %p436, %p437
      %p440 = scmp.ne.s32.totalorder %s425, %s439
      %p441 = scmp.eq.s32.totalorder %s47, 0
      %p442 = por %p440, %p441
      %s443 = ssub.s32 %s48, %s60
      %s444 = ssub.s32 %s49, %s56
      %s445 = sor.u32 %s443, %s444
      %p446 = scmp.eq.s32.totalorder %s445, 0
      %s448 = sadd.s32 %s447, 1
      %s449 = scalar_select %p446, %s447, %s448
      %p452 = pneg %p446
      %p453 = scmp.eq.s32.totalorder %s41, 2
      %p454 = por %p452, %p453
      %p455 = scmp.ne.s32.totalorder %s447, %s450
      %p456 = scmp.eq.s32.totalorder %s41, 0
      %p457 = por %p455, %p456
      %p458 = scmp.ne.s32.totalorder %s447, %s450
      %p459 = scmp.eq.s32.totalorder %s46, 2
      %p460 = por %p458, %p459
      %p461 = scmp.ne.s32.totalorder %s450, %s451
      %p462 = scmp.eq.s32.totalorder %s46, 0
      %p463 = por %p461, %p462
      %p464 = scmp.ne.s32.totalorder %s450, %s451
      %p465 = scmp.eq.s32.totalorder %s47, 2
      %p466 = por %p464, %p465
      %p468 = scmp.ne.s32.totalorder %s451, %s467
      %p469 = scmp.eq.s32.totalorder %s47, 0
      %p470 = por %p468, %p469
      %s471 = ssub.s32 %s48, %s60
      %s472 = ssub.s32 %s49, %s56
      %s473 = sor.u32 %s471, %s472
      %p474 = scmp.eq.s32.totalorder %s473, 0
      %s476 = sadd.s32 %s475, 1
      %s477 = scalar_select %p474, %s475, %s476
      %p480 = pneg %p474
      %p481 = scmp.eq.s32.totalorder %s41, 2
      %p482 = por %p480, %p481
      %p483 = scmp.ne.s32.totalorder %s475, %s478
      %p484 = scmp.eq.s32.totalorder %s41, 0
      %p485 = por %p483, %p484
      %p486 = scmp.ne.s32.totalorder %s475, %s478
      %p487 = scmp.eq.s32.totalorder %s46, 2
      %p488 = por %p486, %p487
      %p489 = scmp.ne.s32.totalorder %s478, %s479
      %p490 = scmp.eq.s32.totalorder %s46, 0
      %p491 = por %p489, %p490
      %p492 = scmp.ne.s32.totalorder %s478, %s479
      %p493 = scmp.eq.s32.totalorder %s47, 2
      %p494 = por %p492, %p493
      %p496 = scmp.ne.s32.totalorder %s479, %s495
      %p497 = scmp.eq.s32.totalorder %s47, 0
      %p498 = por %p496, %p497
      %p499 = scmp.le.s32.totalorder 1, %s41
      %p500 = scmp.lt.s32.totalorder %s41, 4
      %p501 = pnand %p499, %p500
      %p502 = pneg %p501
      // Predicated region
      $region9: #{tpu_custom_call.1} parent=5 // pred_check
        _
      $region10: #{tpu_custom_call.1} parent=5 // pred_check_branch
        %504 = sbr.rel (%p501) target = $region12
      $region11: #{tpu_custom_call.1} parent=5 // pred_region
        %s505 = ssub.s32 %s41, 1
        // Predicated region
        $region13: #{tpu_custom_call.1} parent=11 // pred_check
          %p506 = pneg %p414
        $region14: #{tpu_custom_call.1} parent=11 // pred_check_branch
          %508 = sbr.rel (%p506) target = $region16
        $region15: #{tpu_custom_call.1} parent=11 // pred_region
          _
        $region16: #{tpu_custom_call.1} parent=11 // pred_fallthru
          _
        // Predicated region
        $region17: #{tpu_custom_call.1} parent=11 // pred_check
          %p509 = pneg %p435
        $region18: #{tpu_custom_call.1} parent=11 // pred_check_branch
          %511 = sbr.rel (%p509) target = $region20
        $region19: #{tpu_custom_call.1} parent=11 // pred_region
          _
        $region20: #{tpu_custom_call.1} parent=11 // pred_fallthru
          _
      $region12: #{tpu_custom_call.1} parent=5 // pred_fallthru
        _
      %p512 = scmp.lt.s32.totalorder %s41, 3
      // Predicated region
      $region21: #{tpu_custom_call.1} parent=5 // pred_check
        %p513 = pneg %p512
      $region22: #{tpu_custom_call.1} parent=5 // pred_check_branch
        %515 = sbr.rel (%p513) target = $region24
      $region23: #{tpu_custom_call.1} parent=5 // pred_region
        // Predicated region
        $region25: #{tpu_custom_call.1} parent=23 // pred_check
          %p516 = pneg %p75
        $region26: #{tpu_custom_call.1} parent=23 // pred_check_branch
          %518 = sbr.rel (%p516) target = $region28
        $region27: #{tpu_custom_call.1} parent=23 // pred_region
          %s519 = sand.u32 %s65, 1
          %s520 = scalar_lea.sflag [#allocation3], %s519
          %s521 = sand.u32 %s65, 1
          %s522 = smul.addr %s521, 16
          %s523 = scalar_lea.vmem [#allocation2], %s522
          %s524 = smul.u32 2, %s49
          %s526 = ssub.s32 256, 256
          %527 = vsyncadd %s520, %s526
          %s528 = smul.addr %s48, 2
          %s529 = sadd.s32 %s524, %s528
          %s530 = smul.addr %s529, 128
          %s531 = scalar_lea.hbm %s0, %s530
          %s532 = sshll.u32 %s523, 4
          %s533 = int_to_ptr.vmem [resolvable:$true] %s532
          %538 = dma.hbm_to_vmem [thread:$0]  %s531, 256, %s533, %s520, 128, 128, 8
        $region28: #{tpu_custom_call.1} parent=23 // pred_fallthru
          _
        // Predicated region
        $region29: #{tpu_custom_call.1} parent=23 // pred_check
          %p539 = pneg %p101
        $region30: #{tpu_custom_call.1} parent=23 // pred_check_branch
          %541 = sbr.rel (%p539) target = $region32
        $region31: #{tpu_custom_call.1} parent=23 // pred_region
          %s542 = sand.u32 %s41, 1
          %s543 = scalar_lea.sflag [#allocation6], %s542
          %s544 = sand.u32 %s91, 1
          %s545 = smul.addr %s544, 16
          %s546 = scalar_lea.vmem [#allocation5], %s545
          %s548 = ssub.s32 256, 256
          %549 = vsyncadd %s543, %s548
          %s550 = smul.addr %s48, 2
          %s551 = smul.addr %s550, 128
          %s552 = scalar_lea.hbm %s1, %s551
          %s553 = sshll.u32 %s546, 4
          %s554 = int_to_ptr.vmem [resolvable:$true] %s553
          %559 = dma.hbm_to_vmem [thread:$0]  %s552, 256, %s554, %s543, 128, 128, 8
        $region32: #{tpu_custom_call.1} parent=23 // pred_fallthru
          _
        // Predicated region
        $region33: #{tpu_custom_call.1} parent=23 // pred_check
          %p560 = pneg %p127
        $region34: #{tpu_custom_call.1} parent=23 // pred_check_branch
          %562 = sbr.rel (%p560) target = $region36
        $region35: #{tpu_custom_call.1} parent=23 // pred_region
          %p563 = scmp.lt.s32.totalorder %s48, 2
          %s564 = scalar_select %p563, %s48, 2
          %s565 = scalar_lea.vmem %s2, %s564
        $region36: #{tpu_custom_call.1} parent=23 // pred_fallthru
          _
        // Predicated region
        $region37: #{tpu_custom_call.1} parent=23 // pred_check
          %p566 = pneg %p153
        $region38: #{tpu_custom_call.1} parent=23 // pred_check_branch
          %568 = sbr.rel (%p566) target = $region40
        $region39: #{tpu_custom_call.1} parent=23 // pred_region
          %s569 = sand.u32 %s41, 1
          %s570 = scalar_lea.sflag [#allocation6], %s569
          %s571 = sand.u32 %s143, 1
          %s572 = smul.addr %s571, 32
          %s573 = scalar_lea.vmem [#allocation7], %s572
          %s575 = ssub.s32 512, 512
          %576 = vsyncadd %s570, %s575
          %s577 = smul.addr %s48, 4
          %s578 = smul.addr %s577, 128
          %s579 = scalar_lea.hbm %s3, %s578
          %s580 = sshll.u32 %s573, 4
          %s581 = int_to_ptr.vmem [resolvable:$true] %s580
          %586 = dma.hbm_to_vmem [thread:$0]  %s579, 512, %s581, %s570, 128, 128, 8
        $region40: #{tpu_custom_call.1} parent=23 // pred_fallthru
          _
        // Predicated region
        $region41: #{tpu_custom_call.1} parent=23 // pred_check
          %p587 = pneg %p179
        $region42: #{tpu_custom_call.1} parent=23 // pred_check_branch
          %589 = sbr.rel (%p587) target = $region44
        $region43: #{tpu_custom_call.1} parent=23 // pred_region
          %p590 = scmp.lt.s32.totalorder %s48, 2
          %s591 = scalar_select %p590, %s48, 2
          %s592 = scalar_lea.vmem %s4, %s591
        $region44: #{tpu_custom_call.1} parent=23 // pred_fallthru
          _
        // Predicated region
        $region45: #{tpu_custom_call.1} parent=23 // pred_check
          %p593 = pneg %p205
        $region46: #{tpu_custom_call.1} parent=23 // pred_check_branch
          %595 = sbr.rel (%p593) target = $region48
        $region47: #{tpu_custom_call.1} parent=23 // pred_region
          %s596 = sand.u32 %s41, 1
          %s597 = scalar_lea.sflag [#allocation9], %s596
          %s598 = sand.u32 %s195, 1
          %s599 = smul.addr %s598, 32
          %s600 = scalar_lea.vmem [#allocation8], %s599
          %s602 = ssub.s32 512, 512
          %603 = vsyncadd %s597, %s602
          %s604 = smul.addr %s48, 4
          %s605 = smul.addr %s604, 128
          %s606 = scalar_lea.hbm %s5, %s605
          %s607 = sshll.u32 %s600, 4
          %s608 = int_to_ptr.vmem [resolvable:$true] %s607
          %613 = dma.hbm_to_vmem [thread:$0]  %s606, 512, %s608, %s597, 128, 128, 8
        $region48: #{tpu_custom_call.1} parent=23 // pred_fallthru
          _
        // Predicated region
        $region49: #{tpu_custom_call.1} parent=23 // pred_check
          %p614 = pneg %p231
        $region50: #{tpu_custom_call.1} parent=23 // pred_check_branch
          %616 = sbr.rel (%p614) target = $region52
        $region51: #{tpu_custom_call.1} parent=23 // pred_region
          %p617 = scmp.lt.s32.totalorder %s48, 2
          %s618 = scalar_select %p617, %s48, 2
          %s619 = scalar_lea.vmem %s6, %s618
        $region52: #{tpu_custom_call.1} parent=23 // pred_fallthru
          _
        // Predicated region
        $region53: #{tpu_custom_call.1} parent=23 // pred_check
          %p620 = pneg %p257
        $region54: #{tpu_custom_call.1} parent=23 // pred_check_branch
          %622 = sbr.rel (%p620) target = $region56
        $region55: #{tpu_custom_call.1} parent=23 // pred_region
          %s623 = sand.u32 %s41, 1
          %s624 = scalar_lea.sflag [#allocation9], %s623
          %s625 = sand.u32 %s247, 1
          %s626 = smul.addr %s625, 32
          %s627 = scalar_lea.vmem [#allocation10], %s626
          %s629 = ssub.s32 512, 512
          %630 = vsyncadd %s624, %s629
          %s631 = smul.addr %s48, 4
          %s632 = smul.addr %s631, 128
          %s633 = scalar_lea.hbm %s7, %s632
          %s634 = sshll.u32 %s627, 4
          %s635 = int_to_ptr.vmem [resolvable:$true] %s634
          %640 = dma.hbm_to_vmem [thread:$0]  %s633, 512, %s635, %s624, 128, 128, 8
        $region56: #{tpu_custom_call.1} parent=23 // pred_fallthru
          _
        // Predicated region
        $region57: #{tpu_custom_call.1} parent=23 // pred_check
          %p641 = pneg %p283
        $region58: #{tpu_custom_call.1} parent=23 // pred_check_branch
          %643 = sbr.rel (%p641) target = $region60
        $region59: #{tpu_custom_call.1} parent=23 // pred_region
          %p644 = scmp.lt.s32.totalorder %s48, 2
          %s645 = scalar_select %p644, %s48, 2
          %s646 = scalar_lea.vmem %s8, %s645
        $region60: #{tpu_custom_call.1} parent=23 // pred_fallthru
          _
        // Predicated region
        $region61: #{tpu_custom_call.1} parent=23 // pred_check
          %p647 = pneg %p309
        $region62: #{tpu_custom_call.1} parent=23 // pred_check_branch
          %649 = sbr.rel (%p647) target = $region64
        $region63: #{tpu_custom_call.1} parent=23 // pred_region
          %s650 = sand.u32 %s41, 1
          %s651 = scalar_lea.sflag [#allocation12], %s650
          %s652 = sand.u32 %s299, 1
          %s653 = smul.addr %s652, 32
          %s654 = scalar_lea.vmem [#allocation11], %s653
          %s656 = ssub.s32 512, 512
          %657 = vsyncadd %s651, %s656
          %s658 = smul.addr %s48, 4
          %s659 = smul.addr %s658, 128
          %s660 = scalar_lea.hbm %s9, %s659
          %s661 = sshll.u32 %s654, 4
          %s662 = int_to_ptr.vmem [resolvable:$true] %s661
          %667 = dma.hbm_to_vmem [thread:$0]  %s660, 512, %s662, %s651, 128, 128, 8
        $region64: #{tpu_custom_call.1} parent=23 // pred_fallthru
          _
        // Predicated region
        $region65: #{tpu_custom_call.1} parent=23 // pred_check
          %p668 = pneg %p335
        $region66: #{tpu_custom_call.1} parent=23 // pred_check_branch
          %670 = sbr.rel (%p668) target = $region68
        $region67: #{tpu_custom_call.1} parent=23 // pred_region
          %p671 = scmp.lt.s32.totalorder %s48, 2
          %s672 = scalar_select %p671, %s48, 2
          %s673 = scalar_lea.vmem %s10, %s672
        $region68: #{tpu_custom_call.1} parent=23 // pred_fallthru
          _
        // Predicated region
        $region69: #{tpu_custom_call.1} parent=23 // pred_check
          %p674 = pneg %p361
        $region70: #{tpu_custom_call.1} parent=23 // pred_check_branch
          %676 = sbr.rel (%p674) target = $region72
        $region71: #{tpu_custom_call.1} parent=23 // pred_region
          %s677 = sand.u32 %s41, 1
          %s678 = scalar_lea.sflag [#allocation12], %s677
          %s679 = sand.u32 %s351, 1
          %s680 = smul.addr %s679, 32
          %s681 = scalar_lea.vmem [#allocation13], %s680
          %s683 = ssub.s32 512, 512
          %684 = vsyncadd %s678, %s683
          %s685 = smul.addr %s48, 4
          %s686 = smul.addr %s685, 128
          %s687 = scalar_lea.hbm %s11, %s686
          %s688 = sshll.u32 %s681, 4
          %s689 = int_to_ptr.vmem [resolvable:$true] %s688
          %694 = dma.hbm_to_vmem [thread:$0]  %s687, 512, %s689, %s678, 128, 128, 8
        $region72: #{tpu_custom_call.1} parent=23 // pred_fallthru
          _
        // Predicated region
        $region73: #{tpu_custom_call.1} parent=23 // pred_check
          %p695 = pneg %p387
        $region74: #{tpu_custom_call.1} parent=23 // pred_check_branch
          %697 = sbr.rel (%p695) target = $region76
        $region75: #{tpu_custom_call.1} parent=23 // pred_region
          %p698 = scmp.lt.s32.totalorder %s48, 2
          %s699 = scalar_select %p698, %s48, 2
          %s700 = scalar_lea.vmem %s12, %s699
        $region76: #{tpu_custom_call.1} parent=23 // pred_fallthru
          _
      $region24: #{tpu_custom_call.1} parent=5 // pred_fallthru
        _
      %p701 = scmp.le.s32.totalorder 1, %s41
      %p702 = scmp.lt.s32.totalorder %s41, 4
      %p703 = pnand %p701, %p702
      %p704 = pneg %p703
      // Predicated region
      $region77: #{tpu_custom_call.1} parent=5 // pred_check
        _
      $region78: #{tpu_custom_call.1} parent=5 // pred_check_branch
        %706 = sbr.rel (%p703) target = $region80
      $region79: #{tpu_custom_call.1} parent=5 // pred_region
        %s707 = ssub.s32 %s41, 1
        %s708 = sand.u32 %s68, 1
        %s709 = scalar_lea.sflag [#allocation3], %s708
        %s710 = sand.u32 %s68, 1
        %s711 = smul.addr %s710, 16
        %s712 = scalar_lea.vmem [#allocation2], %s711
        // Predicated region
        $region81: #{tpu_custom_call.1} parent=79 // pred_check
          %p713 = pneg %p81
        $region82: #{tpu_custom_call.1} parent=79 // pred_check_branch
          %715 = sbr.rel (%p713) target = $region84
        $region83: #{tpu_custom_call.1} parent=79 // pred_region
          %716 = dma.done %s709, 256
        $region84: #{tpu_custom_call.1} parent=79 // pred_fallthru
          _
        %s717 = sand.u32 %s46, 1
        %s718 = scalar_lea.sflag [#allocation6], %s717
        %s719 = sand.u32 %s94, 1
        %s720 = smul.addr %s719, 16
        %s721 = scalar_lea.vmem [#allocation5], %s720
        // Predicated region
        $region85: #{tpu_custom_call.1} parent=79 // pred_check
          %p722 = pneg %p107
        $region86: #{tpu_custom_call.1} parent=79 // pred_check_branch
          %724 = sbr.rel (%p722) target = $region88
        $region87: #{tpu_custom_call.1} parent=79 // pred_region
          %725 = dma.done %s718, 256
        $region88: #{tpu_custom_call.1} parent=79 // pred_fallthru
          _
        %s726 = sand.u32 %s46, 1
        %s727 = scalar_lea.sflag [#allocation6], %s726
        %s728 = sand.u32 %s146, 1
        %s729 = smul.addr %s728, 32
        %s730 = scalar_lea.vmem [#allocation7], %s729
        // Predicated region
        $region89: #{tpu_custom_call.1} parent=79 // pred_check
          %p731 = pneg %p159
        $region90: #{tpu_custom_call.1} parent=79 // pred_check_branch
          %733 = sbr.rel (%p731) target = $region92
        $region91: #{tpu_custom_call.1} parent=79 // pred_region
          %734 = dma.done %s727, 512
        $region92: #{tpu_custom_call.1} parent=79 // pred_fallthru
          _
        %s735 = sand.u32 %s46, 1
        %s736 = scalar_lea.sflag [#allocation9], %s735
        %s737 = sand.u32 %s198, 1
        %s738 = smul.addr %s737, 32
        %s739 = scalar_lea.vmem [#allocation8], %s738
        // Predicated region
        $region93: #{tpu_custom_call.1} parent=79 // pred_check
          %p740 = pneg %p211
        $region94: #{tpu_custom_call.1} parent=79 // pred_check_branch
          %742 = sbr.rel (%p740) target = $region96
        $region95: #{tpu_custom_call.1} parent=79 // pred_region
          %743 = dma.done %s736, 512
        $region96: #{tpu_custom_call.1} parent=79 // pred_fallthru
          _
        %s744 = sand.u32 %s46, 1
        %s745 = scalar_lea.sflag [#allocation9], %s744
        %s746 = sand.u32 %s250, 1
        %s747 = smul.addr %s746, 32
        %s748 = scalar_lea.vmem [#allocation10], %s747
        // Predicated region
        $region97: #{tpu_custom_call.1} parent=79 // pred_check
          %p749 = pneg %p263
        $region98: #{tpu_custom_call.1} parent=79 // pred_check_branch
          %751 = sbr.rel (%p749) target = $region100
        $region99: #{tpu_custom_call.1} parent=79 // pred_region
          %752 = dma.done %s745, 512
        $region100: #{tpu_custom_call.1} parent=79 // pred_fallthru
          _
        %s753 = sand.u32 %s46, 1
        %s754 = scalar_lea.sflag [#allocation12], %s753
        %s755 = sand.u32 %s302, 1
        %s756 = smul.addr %s755, 32
        %s757 = scalar_lea.vmem [#allocation11], %s756
        // Predicated region
        $region101: #{tpu_custom_call.1} parent=79 // pred_check
          %p758 = pneg %p315
        $region102: #{tpu_custom_call.1} parent=79 // pred_check_branch
          %760 = sbr.rel (%p758) target = $region104
        $region103: #{tpu_custom_call.1} parent=79 // pred_region
          %761 = dma.done %s754, 512
        $region104: #{tpu_custom_call.1} parent=79 // pred_fallthru
          _
        %s762 = sand.u32 %s46, 1
        %s763 = scalar_lea.sflag [#allocation12], %s762
        %s764 = sand.u32 %s354, 1
        %s765 = smul.addr %s764, 32
        %s766 = scalar_lea.vmem [#allocation13], %s765
        // Predicated region
        $region105: #{tpu_custom_call.1} parent=79 // pred_check
          %p767 = pneg %p367
        $region106: #{tpu_custom_call.1} parent=79 // pred_check_branch
          %769 = sbr.rel (%p767) target = $region108
        $region107: #{tpu_custom_call.1} parent=79 // pred_region
          %770 = dma.done %s763, 512
        $region108: #{tpu_custom_call.1} parent=79 // pred_fallthru
          _
        %s771 = sand.u32 %s68, 1
        %s772 = scalar_lea.sflag [#allocation3], %s771
        %s773 = sand.u32 %s68, 1
        %s774 = smul.addr %s773, 16
        %s775 = scalar_lea.vmem [#allocation2], %s774
        %p776 = pneg %p81
        %p777 = pneg %p78
        %s778 = sand.u32 %s46, 1
        %s779 = scalar_lea.sflag [#allocation6], %s778
        %s780 = sand.u32 %s94, 1
        %s781 = smul.addr %s780, 16
        %s782 = scalar_lea.vmem [#allocation5], %s781
        %p783 = pneg %p107
        %p784 = pneg %p104
        %p785 = scmp.lt.s32.totalorder %s50, 2
        %s786 = scalar_select %p785, %s50, 2
        %s787 = scalar_lea.vmem %s2, %s786
        %p788 = pneg %p133
        %p789 = pneg %p130
        %s790 = sand.u32 %s46, 1
        %s791 = scalar_lea.sflag [#allocation6], %s790
        %s792 = sand.u32 %s146, 1
        %s793 = smul.addr %s792, 32
        %s794 = scalar_lea.vmem [#allocation7], %s793
        %p795 = pneg %p159
        %p796 = pneg %p156
        %p797 = scmp.lt.s32.totalorder %s50, 2
        %s798 = scalar_select %p797, %s50, 2
        %s799 = scalar_lea.vmem %s4, %s798
        %p800 = pneg %p185
        %p801 = pneg %p182
        %s802 = sand.u32 %s46, 1
        %s803 = scalar_lea.sflag [#allocation9], %s802
        %s804 = sand.u32 %s198, 1
        %s805 = smul.addr %s804, 32
        %s806 = scalar_lea.vmem [#allocation8], %s805
        %p807 = pneg %p211
        %p808 = pneg %p208
        %p809 = scmp.lt.s32.totalorder %s50, 2
        %s810 = scalar_select %p809, %s50, 2
        %s811 = scalar_lea.vmem %s6, %s810
        %p812 = pneg %p237
        %p813 = pneg %p234
        %s814 = sand.u32 %s46, 1
        %s815 = scalar_lea.sflag [#allocation9], %s814
        %s816 = sand.u32 %s250, 1
        %s817 = smul.addr %s816, 32
        %s818 = scalar_lea.vmem [#allocation10], %s817
        %p819 = pneg %p263
        %p820 = pneg %p260
        %p821 = scmp.lt.s32.totalorder %s50, 2
        %s822 = scalar_select %p821, %s50, 2
        %s823 = scalar_lea.vmem %s8, %s822
        %p824 = pneg %p289
        %p825 = pneg %p286
        %s826 = sand.u32 %s46, 1
        %s827 = scalar_lea.sflag [#allocation12], %s826
        %s828 = sand.u32 %s302, 1
        %s829 = smul.addr %s828, 32
        %s830 = scalar_lea.vmem [#allocation11], %s829
        %p831 = pneg %p315
        %p832 = pneg %p312
        %p833 = scmp.lt.s32.totalorder %s50, 2
        %s834 = scalar_select %p833, %s50, 2
        %s835 = scalar_lea.vmem %s10, %s834
        %p836 = pneg %p341
        %p837 = pneg %p338
        %s838 = sand.u32 %s46, 1
        %s839 = scalar_lea.sflag [#allocation12], %s838
        %s840 = sand.u32 %s354, 1
        %s841 = smul.addr %s840, 32
        %s842 = scalar_lea.vmem [#allocation13], %s841
        %p843 = pneg %p367
        %p844 = pneg %p364
        %p845 = scmp.lt.s32.totalorder %s50, 2
        %s846 = scalar_select %p845, %s50, 2
        %s847 = scalar_lea.vmem %s12, %s846
        %p848 = pneg %p393
        %p849 = pneg %p390
        %p850 = pneg %p414
        %p851 = pneg %p411
        %p852 = pneg %p435
        %p853 = pneg %p432
        %p854 = pneg %p463
        %p855 = pneg %p460
        %s856 = sand.u32 %s450, 1
        %s857 = scalar_lea.sflag [#allocation4], %s856
        %s858 = sand.u32 %s450, 1
        %s859 = smul.addr %s858, 16
        %s860 = scalar_lea.vmem [#allocation14], %s859
        %p861 = pneg %p491
        %p862 = pneg %p488
        %s863 = sand.u32 %s478, 1
        %s864 = scalar_lea.sflag [#allocation16], %s863
        %s865 = sand.u32 %s478, 1
        %s866 = smul.addr %s865, 16
        %s867 = scalar_lea.vmem [#allocation15], %s866
        %s868 = smul.u32 2, %s51
        %p869 = scmp.lt.s32.totalorder %s50, 2
        %s870 = scalar_select %p869, %s50, 2
        %s871 = scalar_lea.vmem %s2, %s870
        %p872 = scmp.lt.s32.totalorder %s50, 2
        %s873 = scalar_select %p872, %s50, 2
        %s874 = scalar_lea.vmem %s4, %s873
        %p875 = scmp.lt.s32.totalorder %s50, 2
        %s876 = scalar_select %p875, %s50, 2
        %s877 = scalar_lea.vmem %s6, %s876
        %p878 = scmp.lt.s32.totalorder %s50, 2
        %s879 = scalar_select %p878, %s50, 2
        %s880 = scalar_lea.vmem %s8, %s879
        %p881 = scmp.lt.s32.totalorder %s50, 2
        %s882 = scalar_select %p881, %s50, 2
        %s883 = scalar_lea.vmem %s10, %s882
        %p884 = scmp.lt.s32.totalorder %s50, 2
        %s885 = scalar_select %p884, %s50, 2
        %s886 = scalar_lea.vmem %s12, %s885
        %s887 = smul.u32 2, %s51
        %s888 = smul.u32 2, %s51
        %v889 = vld [vmem:[%s712] sm:$0xff]
        %v890 = vld [vmem:[%s712 + $0x8] sm:$0xff]
        %v891 = vld [vmem:[%s721] sm:$0xff]
        %v892 = vld [vmem:[%s721 + $0x8] sm:$0xf]
        %v893 = vld [vmem:[%s871] sm:$0x1]
        %v895 = vlaneseq
        %v896 = vshrl.u32 %v895, 7
        %v897 = vsub.s32 0, %v896
        %v898 = vrot.slane %v893, %v897
        %vm900 = vcmask 97280
        %v902 = vsel %vm900, %v889, 0
        %v905 = vsel %vm900, %v890, 0
        %vm907 = vcmask 1043456
        %v909 = vsel %vm907, %v892, 0
        %911 = vmatprep.subr.mxu0 0.0
        %912 = vmatpush1.msra.mxu0 0.0
        %913 = vmatprep.subr.mxu0 0.0
        %914 = vmatpush1.msra.mxu0 0.0
        %915 = vmatprep.subr.mxu0 0.0
        %916 = vmatpush1.msra.mxu0 0.0
        %917 = vmatprep.subr.mxu0 0.0
        %918 = vmatpush1.msra.mxu0 0.0
        %919 = vmatprep.subr.mxu0 0.0
        %920 = vmatpush1.msra.mxu0 0.0
        %921 = vmatprep.subr.mxu0 0.0
        %922 = vmatpush1.msra.mxu0 0.0
        %923 = vmatprep.subr.mxu0 0.0
        %924 = vmatpush1.msra.mxu0 0.0
        %925 = vmatprep.subr.mxu0 0.0
        %926 = vmatpush1.msra.mxu0 0.0
        %927 = vmatprep.subr.mxu0 0.0
        %928 = vmatpush1.msra.mxu0 0.0
        %929 = vmatprep.subr.mxu0 0.0
        %930 = vmatpush1.msra.mxu0 0.0
        %931 = vmatprep.subr.mxu0 0.0
        %932 = vmatpush1.msra.mxu0 0.0
        %933 = vmatprep.subr.mxu0 0.0
        %934 = vmatpush1.msra.mxu0 0.0
        %935 = vmatprep.subr.mxu0 0.0
        %936 = vmatpush1.msra.mxu0 0.0
        %937 = vmatprep.subr.mxu0 0.0
        %938 = vmatpush1.msra.mxu0 0.0
        %939 = vmatprep.subr.mxu0 0.0
        %940 = vmatpush1.msra.mxu0 %v909
        %941 = vmatprep.subr.mxu0 0.0
        %942 = vmatpush1.msra.mxu0 %v891
        %943 = vmatprep.subr.mxu0 0.0
        %944 = vmatpush2.msra.mxu0 0.0
        %945 = vmatprep.subr.mxu0 0.0
        %946 = vmatpush2.msra.mxu0 0.0
        %947 = vmatprep.subr.mxu0 0.0
        %948 = vmatpush2.msra.mxu0 0.0
        %949 = vmatprep.subr.mxu0 0.0
        %950 = vmatpush2.msra.mxu0 0.0
        %951 = vmatprep.subr.mxu0 0.0
        %952 = vmatpush2.msra.mxu0 0.0
        %953 = vmatprep.subr.mxu0 0.0
        %954 = vmatpush2.msra.mxu0 0.0
        %955 = vmatprep.subr.mxu0 0.0
        %956 = vmatpush2.msra.mxu0 0.0
        %957 = vmatprep.subr.mxu0 0.0
        %958 = vmatpush2.msra.mxu0 0.0
        %959 = vmatprep.subr.mxu0 0.0
        %960 = vmatpush2.msra.mxu0 0.0
        %961 = vmatprep.subr.mxu0 0.0
        %962 = vmatpush2.msra.mxu0 0.0
        %963 = vmatprep.subr.mxu0 0.0
        %964 = vmatpush2.msra.mxu0 0.0
        %965 = vmatprep.subr.mxu0 0.0
        %966 = vmatpush2.msra.mxu0 0.0
        %967 = vmatprep.subr.mxu0 0.0
        %968 = vmatpush2.msra.mxu0 0.0
        %969 = vmatprep.subr.mxu0 0.0
        %970 = vmatpush2.msra.mxu0 0.0
        %971 = vmatprep.subr.mxu0 0.0
        %972 = vmatpush2.msra.mxu0 0.0
        %973 = vmatprep.subr.mxu0 0.0
        %974 = vmatpush2.msra.mxu0 0.0
        %975 = vmatprep.mubr.f32.mxu0 0.0
        %976 = vmatmul.mubr.f32.gmra.mxu0 %v902
        %v977 = vpop.f32.mrf.mxu0
        %v978 = vadd.f32 %v898, %v977
        %v979 = vpop.f32.mrf.mxu0
        %980 = vmatprep.mubr.f32.mxu0 0.0
        %981 = vmatmul.mubr.f32.gmra.mxu0 %v905
        %v982 = vpop.f32.mrf.mxu0
        %v983 = vadd.f32 %v898, %v982
        %v984 = vpop.f32.mrf.mxu0
        %985 = vdwg.mxu0
        %v986 = vsub.f32 0.0, %v978
        %v987 = vsub.f32 0.0, %v983
        %v988 = vmul.f32 %v986, 1.442695
        %v989 = vpow.pop %v988
        %v990 = vmul.f32 %v987, 1.442695
        %v991 = vpow.pop %v990
        %v992 = vadd.f32 %v989, 1.0
        %v993 = vadd.f32 %v991, 1.0
        %v994 = vrcp.pop %v992
        %v995 = vmul.f32 1.0, %v994
        %v996 = vrcp.pop %v993
        %v997 = vmul.f32 1.0, %v996
        %v998 = vmul.f32 %v978, %v995
        %v999 = vmul.f32 %v983, %v997
        %v1000 = vld [vmem:[%s730] sm:$0xff]
        %v1001 = vld [vmem:[%s730 + $0x8] sm:$0xff]
        %v1002 = vld [vmem:[%s730 + $0x10] sm:$0xff]
        %v1003 = vld [vmem:[%s730 + $0x18] sm:$0xff]
        %v1004 = vld [vmem:[%s874] sm:$0x1]
        %v1006 = vlaneseq
        %v1007 = vshrl.u32 %v1006, 7
        %v1008 = vsub.s32 0, %v1007
        %v1009 = vrot.slane %v1004, %v1008
        %vm1011 = vcmask 261120
        %v1013 = vsel %vm1011, %v998, 0
        %v1016 = vsel %vm1011, %v999, 0
        %1018 = vmatprep.subr.mxu0 0.0
        %1019 = vmatpush1.msra.mxu0 0.0
        %1020 = vmatprep.subr.mxu0 0.0
        %1021 = vmatpush1.msra.mxu0 0.0
        %1022 = vmatprep.subr.mxu0 0.0
        %1023 = vmatpush1.msra.mxu0 0.0
        %1024 = vmatprep.subr.mxu0 0.0
        %1025 = vmatpush1.msra.mxu0 0.0
        %1026 = vmatprep.subr.mxu0 0.0
        %1027 = vmatpush1.msra.mxu0 0.0
        %1028 = vmatprep.subr.mxu0 0.0
        %1029 = vmatpush1.msra.mxu0 0.0
        %1030 = vmatprep.subr.mxu0 0.0
        %1031 = vmatpush1.msra.mxu0 0.0
        %1032 = vmatprep.subr.mxu0 0.0
        %1033 = vmatpush1.msra.mxu0 0.0
        %1034 = vmatprep.subr.mxu0 0.0
        %1035 = vmatpush1.msra.mxu0 0.0
        %1036 = vmatprep.subr.mxu0 0.0
        %1037 = vmatpush1.msra.mxu0 0.0
        %1038 = vmatprep.subr.mxu0 0.0
        %1039 = vmatpush1.msra.mxu0 0.0
        %1040 = vmatprep.subr.mxu0 0.0
        %1041 = vmatpush1.msra.mxu0 0.0
        %1042 = vmatprep.subr.mxu0 0.0
        %1043 = vmatpush1.msra.mxu0 %v1003
        %1044 = vmatprep.subr.mxu0 0.0
        %1045 = vmatpush1.msra.mxu0 %v1002
        %1046 = vmatprep.subr.mxu0 0.0
        %1047 = vmatpush1.msra.mxu0 %v1001
        %1048 = vmatprep.subr.mxu0 0.0
        %1049 = vmatpush1.msra.mxu0 %v1000
        %1050 = vmatprep.subr.mxu0 0.0
        %1051 = vmatpush2.msra.mxu0 0.0
        %1052 = vmatprep.subr.mxu0 0.0
        %1053 = vmatpush2.msra.mxu0 0.0
        %1054 = vmatprep.subr.mxu0 0.0
        %1055 = vmatpush2.msra.mxu0 0.0
        %1056 = vmatprep.subr.mxu0 0.0
        %1057 = vmatpush2.msra.mxu0 0.0
        %1058 = vmatprep.subr.mxu0 0.0
        %1059 = vmatpush2.msra.mxu0 0.0
        %1060 = vmatprep.subr.mxu0 0.0
        %1061 = vmatpush2.msra.mxu0 0.0
        %1062 = vmatprep.subr.mxu0 0.0
        %1063 = vmatpush2.msra.mxu0 0.0
        %1064 = vmatprep.subr.mxu0 0.0
        %1065 = vmatpush2.msra.mxu0 0.0
        %1066 = vmatprep.subr.mxu0 0.0
        %1067 = vmatpush2.msra.mxu0 0.0
        %1068 = vmatprep.subr.mxu0 0.0
        %1069 = vmatpush2.msra.mxu0 0.0
        %1070 = vmatprep.subr.mxu0 0.0
        %1071 = vmatpush2.msra.mxu0 0.0
        %1072 = vmatprep.subr.mxu0 0.0
        %1073 = vmatpush2.msra.mxu0 0.0
        %1074 = vmatprep.subr.mxu0 0.0
        %1075 = vmatpush2.msra.mxu0 0.0
        %1076 = vmatprep.subr.mxu0 0.0
        %1077 = vmatpush2.msra.mxu0 0.0
        %1078 = vmatprep.subr.mxu0 0.0
        %1079 = vmatpush2.msra.mxu0 0.0
        %1080 = vmatprep.subr.mxu0 0.0
        %1081 = vmatpush2.msra.mxu0 0.0
        %1082 = vmatprep.mubr.f32.mxu0 0.0
        %1083 = vmatmul.mubr.f32.gmra.mxu0 %v1013
        %v1084 = vpop.f32.mrf.mxu0
        %v1085 = vadd.f32 %v1009, %v1084
        %v1086 = vpop.f32.mrf.mxu0
        %1087 = vmatprep.mubr.f32.mxu0 0.0
        %1088 = vmatmul.mubr.f32.gmra.mxu0 %v1016
        %v1089 = vpop.f32.mrf.mxu0
        %v1090 = vadd.f32 %v1009, %v1089
        %v1091 = vpop.f32.mrf.mxu0
        %1092 = vdwg.mxu0
        %v1093 = vsub.f32 0.0, %v1085
        %v1094 = vsub.f32 0.0, %v1090
        %v1095 = vmul.f32 %v1093, 1.442695
        %v1096 = vpow.pop %v1095
        %v1097 = vmul.f32 %v1094, 1.442695
        %v1098 = vpow.pop %v1097
        %v1099 = vadd.f32 %v1096, 1.0
        %v1100 = vadd.f32 %v1098, 1.0
        %v1101 = vrcp.pop %v1099
        %v1102 = vmul.f32 1.0, %v1101
        %v1103 = vrcp.pop %v1100
        %v1104 = vmul.f32 1.0, %v1103
        %v1105 = vmul.f32 %v1085, %v1102
        %v1106 = vmul.f32 %v1090, %v1104
        %v1107 = vld [vmem:[%s739] sm:$0xff]
        %v1108 = vld [vmem:[%s739 + $0x8] sm:$0xff]
        %v1109 = vld [vmem:[%s739 + $0x10] sm:$0xff]
        %v1110 = vld [vmem:[%s739 + $0x18] sm:$0xff]
        %v1111 = vld [vmem:[%s877] sm:$0x1]
        %v1113 = vlaneseq
        %v1114 = vshrl.u32 %v1113, 7
        %v1115 = vsub.s32 0, %v1114
        %v1116 = vrot.slane %v1111, %v1115
        %v1119 = vsel %vm1011, %v1105, 0
        %v1122 = vsel %vm1011, %v1106, 0
        %1124 = vmatprep.subr.mxu0 0.0
        %1125 = vmatpush1.msra.mxu0 0.0
        %1126 = vmatprep.subr.mxu0 0.0
        %1127 = vmatpush1.msra.mxu0 0.0
        %1128 = vmatprep.subr.mxu0 0.0
        %1129 = vmatpush1.msra.mxu0 0.0
        %1130 = vmatprep.subr.mxu0 0.0
        %1131 = vmatpush1.msra.mxu0 0.0
        %1132 = vmatprep.subr.mxu0 0.0
        %1133 = vmatpush1.msra.mxu0 0.0
        %1134 = vmatprep.subr.mxu0 0.0
        %1135 = vmatpush1.msra.mxu0 0.0
        %1136 = vmatprep.subr.mxu0 0.0
        %1137 = vmatpush1.msra.mxu0 0.0
        %1138 = vmatprep.subr.mxu0 0.0
        %1139 = vmatpush1.msra.mxu0 0.0
        %1140 = vmatprep.subr.mxu0 0.0
        %1141 = vmatpush1.msra.mxu0 0.0
        %1142 = vmatprep.subr.mxu0 0.0
        %1143 = vmatpush1.msra.mxu0 0.0
        %1144 = vmatprep.subr.mxu0 0.0
        %1145 = vmatpush1.msra.mxu0 0.0
        %1146 = vmatprep.subr.mxu0 0.0
        %1147 = vmatpush1.msra.mxu0 0.0
        %1148 = vmatprep.subr.mxu0 0.0
        %1149 = vmatpush1.msra.mxu0 %v1110
        %1150 = vmatprep.subr.mxu0 0.0
        %1151 = vmatpush1.msra.mxu0 %v1109
        %1152 = vmatprep.subr.mxu0 0.0
        %1153 = vmatpush1.msra.mxu0 %v1108
        %1154 = vmatprep.subr.mxu0 0.0
        %1155 = vmatpush1.msra.mxu0 %v1107
        %1156 = vmatprep.subr.mxu0 0.0
        %1157 = vmatpush2.msra.mxu0 0.0
        %1158 = vmatprep.subr.mxu0 0.0
        %1159 = vmatpush2.msra.mxu0 0.0
        %1160 = vmatprep.subr.mxu0 0.0
        %1161 = vmatpush2.msra.mxu0 0.0
        %1162 = vmatprep.subr.mxu0 0.0
        %1163 = vmatpush2.msra.mxu0 0.0
        %1164 = vmatprep.subr.mxu0 0.0
        %1165 = vmatpush2.msra.mxu0 0.0
        %1166 = vmatprep.subr.mxu0 0.0
        %1167 = vmatpush2.msra.mxu0 0.0
        %1168 = vmatprep.subr.mxu0 0.0
        %1169 = vmatpush2.msra.mxu0 0.0
        %1170 = vmatprep.subr.mxu0 0.0
        %1171 = vmatpush2.msra.mxu0 0.0
        %1172 = vmatprep.subr.mxu0 0.0
        %1173 = vmatpush2.msra.mxu0 0.0
        %1174 = vmatprep.subr.mxu0 0.0
        %1175 = vmatpush2.msra.mxu0 0.0
        %1176 = vmatprep.subr.mxu0 0.0
        %1177 = vmatpush2.msra.mxu0 0.0
        %1178 = vmatprep.subr.mxu0 0.0
        %1179 = vmatpush2.msra.mxu0 0.0
        %1180 = vmatprep.subr.mxu0 0.0
        %1181 = vmatpush2.msra.mxu0 0.0
        %1182 = vmatprep.subr.mxu0 0.0
        %1183 = vmatpush2.msra.mxu0 0.0
        %1184 = vmatprep.subr.mxu0 0.0
        %1185 = vmatpush2.msra.mxu0 0.0
        %1186 = vmatprep.subr.mxu0 0.0
        %1187 = vmatpush2.msra.mxu0 0.0
        %1188 = vmatprep.mubr.f32.mxu0 0.0
        %1189 = vmatmul.mubr.f32.gmra.mxu0 %v1119
        %v1190 = vpop.f32.mrf.mxu0
        %v1191 = vadd.f32 %v1116, %v1190
        %v1192 = vpop.f32.mrf.mxu0
        %1193 = vmatprep.mubr.f32.mxu0 0.0
        %1194 = vmatmul.mubr.f32.gmra.mxu0 %v1122
        %v1195 = vpop.f32.mrf.mxu0
        %v1196 = vadd.f32 %v1116, %v1195
        %v1197 = vpop.f32.mrf.mxu0
        %1198 = vdwg.mxu0
        %v1199 = vsub.f32 0.0, %v1191
        %v1200 = vsub.f32 0.0, %v1196
        %v1201 = vmul.f32 %v1199, 1.442695
        %v1202 = vpow.pop %v1201
        %v1203 = vmul.f32 %v1200, 1.442695
        %v1204 = vpow.pop %v1203
        %v1205 = vadd.f32 %v1202, 1.0
        %v1206 = vadd.f32 %v1204, 1.0
        %v1207 = vrcp.pop %v1205
        %v1208 = vmul.f32 1.0, %v1207
        %v1209 = vrcp.pop %v1206
        %v1210 = vmul.f32 1.0, %v1209
        %v1211 = vmul.f32 %v1191, %v1208
        %v1212 = vmul.f32 %v1196, %v1210
        %v1213 = vld [vmem:[%s748] sm:$0xff]
        %v1214 = vld [vmem:[%s748 + $0x8] sm:$0xff]
        %v1215 = vld [vmem:[%s748 + $0x10] sm:$0xff]
        %v1216 = vld [vmem:[%s748 + $0x18] sm:$0xff]
        %v1217 = vld [vmem:[%s880] sm:$0x1]
        %v1219 = vlaneseq
        %v1220 = vshrl.u32 %v1219, 7
        %v1221 = vsub.s32 0, %v1220
        %v1222 = vrot.slane %v1217, %v1221
        %v1225 = vsel %vm1011, %v1211, 0
        %v1228 = vsel %vm1011, %v1212, 0
        %1230 = vmatprep.subr.mxu0 0.0
        %1231 = vmatpush1.msra.mxu0 0.0
        %1232 = vmatprep.subr.mxu0 0.0
        %1233 = vmatpush1.msra.mxu0 0.0
        %1234 = vmatprep.subr.mxu0 0.0
        %1235 = vmatpush1.msra.mxu0 0.0
        %1236 = vmatprep.subr.mxu0 0.0
        %1237 = vmatpush1.msra.mxu0 0.0
        %1238 = vmatprep.subr.mxu0 0.0
        %1239 = vmatpush1.msra.mxu0 0.0
        %1240 = vmatprep.subr.mxu0 0.0
        %1241 = vmatpush1.msra.mxu0 0.0
        %1242 = vmatprep.subr.mxu0 0.0
        %1243 = vmatpush1.msra.mxu0 0.0
        %1244 = vmatprep.subr.mxu0 0.0
        %1245 = vmatpush1.msra.mxu0 0.0
        %1246 = vmatprep.subr.mxu0 0.0
        %1247 = vmatpush1.msra.mxu0 0.0
        %1248 = vmatprep.subr.mxu0 0.0
        %1249 = vmatpush1.msra.mxu0 0.0
        %1250 = vmatprep.subr.mxu0 0.0
        %1251 = vmatpush1.msra.mxu0 0.0
        %1252 = vmatprep.subr.mxu0 0.0
        %1253 = vmatpush1.msra.mxu0 0.0
        %1254 = vmatprep.subr.mxu0 0.0
        %1255 = vmatpush1.msra.mxu0 %v1216
        %1256 = vmatprep.subr.mxu0 0.0
        %1257 = vmatpush1.msra.mxu0 %v1215
        %1258 = vmatprep.subr.mxu0 0.0
        %1259 = vmatpush1.msra.mxu0 %v1214
        %1260 = vmatprep.subr.mxu0 0.0
        %1261 = vmatpush1.msra.mxu0 %v1213
        %1262 = vmatprep.subr.mxu0 0.0
        %1263 = vmatpush2.msra.mxu0 0.0
        %1264 = vmatprep.subr.mxu0 0.0
        %1265 = vmatpush2.msra.mxu0 0.0
        %1266 = vmatprep.subr.mxu0 0.0
        %1267 = vmatpush2.msra.mxu0 0.0
        %1268 = vmatprep.subr.mxu0 0.0
        %1269 = vmatpush2.msra.mxu0 0.0
        %1270 = vmatprep.subr.mxu0 0.0
        %1271 = vmatpush2.msra.mxu0 0.0
        %1272 = vmatprep.subr.mxu0 0.0
        %1273 = vmatpush2.msra.mxu0 0.0
        %1274 = vmatprep.subr.mxu0 0.0
        %1275 = vmatpush2.msra.mxu0 0.0
        %1276 = vmatprep.subr.mxu0 0.0
        %1277 = vmatpush2.msra.mxu0 0.0
        %1278 = vmatprep.subr.mxu0 0.0
        %1279 = vmatpush2.msra.mxu0 0.0
        %1280 = vmatprep.subr.mxu0 0.0
        %1281 = vmatpush2.msra.mxu0 0.0
        %1282 = vmatprep.subr.mxu0 0.0
        %1283 = vmatpush2.msra.mxu0 0.0
        %1284 = vmatprep.subr.mxu0 0.0
        %1285 = vmatpush2.msra.mxu0 0.0
        %1286 = vmatprep.subr.mxu0 0.0
        %1287 = vmatpush2.msra.mxu0 0.0
        %1288 = vmatprep.subr.mxu0 0.0
        %1289 = vmatpush2.msra.mxu0 0.0
        %1290 = vmatprep.subr.mxu0 0.0
        %1291 = vmatpush2.msra.mxu0 0.0
        %1292 = vmatprep.subr.mxu0 0.0
        %1293 = vmatpush2.msra.mxu0 0.0
        %1294 = vmatprep.mubr.f32.mxu0 0.0
        %1295 = vmatmul.mubr.f32.gmra.mxu0 %v1225
        %v1296 = vpop.f32.mrf.mxu0
        %v1297 = vadd.f32 %v1222, %v1296
        %v1298 = vpop.f32.mrf.mxu0
        %1299 = vmatprep.mubr.f32.mxu0 0.0
        %1300 = vmatmul.mubr.f32.gmra.mxu0 %v1228
        %v1301 = vpop.f32.mrf.mxu0
        %v1302 = vadd.f32 %v1222, %v1301
        %v1303 = vpop.f32.mrf.mxu0
        %1304 = vdwg.mxu0
        %v1305 = vsub.f32 0.0, %v1297
        %v1306 = vsub.f32 0.0, %v1302
        %v1307 = vmul.f32 %v1305, 1.442695
        %v1308 = vpow.pop %v1307
        %v1309 = vmul.f32 %v1306, 1.442695
        %v1310 = vpow.pop %v1309
        %v1311 = vadd.f32 %v1308, 1.0
        %v1312 = vadd.f32 %v1310, 1.0
        %v1313 = vrcp.pop %v1311
        %v1314 = vmul.f32 1.0, %v1313
        %v1315 = vrcp.pop %v1312
        %v1316 = vmul.f32 1.0, %v1315
        %v1317 = vmul.f32 %v1297, %v1314
        %v1318 = vmul.f32 %v1302, %v1316
        %v1319 = vld [vmem:[%s757] sm:$0xff]
        %v1320 = vld [vmem:[%s757 + $0x8] sm:$0xff]
        %v1321 = vld [vmem:[%s757 + $0x10] sm:$0xff]
        %v1322 = vld [vmem:[%s757 + $0x18] sm:$0xff]
        %v1323 = vld [vmem:[%s883] sm:$0x1]
        %v1325 = vlaneseq
        %v1326 = vshrl.u32 %v1325, 7
        %v1327 = vsub.s32 0, %v1326
        %v1328 = vrot.slane %v1323, %v1327
        %v1331 = vsel %vm1011, %v1317, 0
        %v1334 = vsel %vm1011, %v1318, 0
        %1336 = vmatprep.subr.mxu0 0.0
        %1337 = vmatpush1.msra.mxu0 0.0
        %1338 = vmatprep.subr.mxu0 0.0
        %1339 = vmatpush1.msra.mxu0 0.0
        %1340 = vmatprep.subr.mxu0 0.0
        %1341 = vmatpush1.msra.mxu0 0.0
        %1342 = vmatprep.subr.mxu0 0.0
        %1343 = vmatpush1.msra.mxu0 0.0
        %1344 = vmatprep.subr.mxu0 0.0
        %1345 = vmatpush1.msra.mxu0 0.0
        %1346 = vmatprep.subr.mxu0 0.0
        %1347 = vmatpush1.msra.mxu0 0.0
        %1348 = vmatprep.subr.mxu0 0.0
        %1349 = vmatpush1.msra.mxu0 0.0
        %1350 = vmatprep.subr.mxu0 0.0
        %1351 = vmatpush1.msra.mxu0 0.0
        %1352 = vmatprep.subr.mxu0 0.0
        %1353 = vmatpush1.msra.mxu0 0.0
        %1354 = vmatprep.subr.mxu0 0.0
        %1355 = vmatpush1.msra.mxu0 0.0
        %1356 = vmatprep.subr.mxu0 0.0
        %1357 = vmatpush1.msra.mxu0 0.0
        %1358 = vmatprep.subr.mxu0 0.0
        %1359 = vmatpush1.msra.mxu0 0.0
        %1360 = vmatprep.subr.mxu0 0.0
        %1361 = vmatpush1.msra.mxu0 %v1322
        %1362 = vmatprep.subr.mxu0 0.0
        %1363 = vmatpush1.msra.mxu0 %v1321
        %1364 = vmatprep.subr.mxu0 0.0
        %1365 = vmatpush1.msra.mxu0 %v1320
        %1366 = vmatprep.subr.mxu0 0.0
        %1367 = vmatpush1.msra.mxu0 %v1319
        %1368 = vmatprep.subr.mxu0 0.0
        %1369 = vmatpush2.msra.mxu0 0.0
        %1370 = vmatprep.subr.mxu0 0.0
        %1371 = vmatpush2.msra.mxu0 0.0
        %1372 = vmatprep.subr.mxu0 0.0
        %1373 = vmatpush2.msra.mxu0 0.0
        %1374 = vmatprep.subr.mxu0 0.0
        %1375 = vmatpush2.msra.mxu0 0.0
        %1376 = vmatprep.subr.mxu0 0.0
        %1377 = vmatpush2.msra.mxu0 0.0
        %1378 = vmatprep.subr.mxu0 0.0
        %1379 = vmatpush2.msra.mxu0 0.0
        %1380 = vmatprep.subr.mxu0 0.0
        %1381 = vmatpush2.msra.mxu0 0.0
        %1382 = vmatprep.subr.mxu0 0.0
        %1383 = vmatpush2.msra.mxu0 0.0
        %1384 = vmatprep.subr.mxu0 0.0
        %1385 = vmatpush2.msra.mxu0 0.0
        %1386 = vmatprep.subr.mxu0 0.0
        %1387 = vmatpush2.msra.mxu0 0.0
        %1388 = vmatprep.subr.mxu0 0.0
        %1389 = vmatpush2.msra.mxu0 0.0
        %1390 = vmatprep.subr.mxu0 0.0
        %1391 = vmatpush2.msra.mxu0 0.0
        %1392 = vmatprep.subr.mxu0 0.0
        %1393 = vmatpush2.msra.mxu0 0.0
        %1394 = vmatprep.subr.mxu0 0.0
        %1395 = vmatpush2.msra.mxu0 0.0
        %1396 = vmatprep.subr.mxu0 0.0
        %1397 = vmatpush2.msra.mxu0 0.0
        %1398 = vmatprep.subr.mxu0 0.0
        %1399 = vmatpush2.msra.mxu0 0.0
        %1400 = vmatprep.mubr.f32.mxu0 0.0
        %1401 = vmatmul.mubr.f32.gmra.mxu0 %v1331
        %v1402 = vpop.f32.mrf.mxu0
        %v1403 = vadd.f32 %v1328, %v1402
        %v1404 = vpop.f32.mrf.mxu0
        %1405 = vmatprep.mubr.f32.mxu0 0.0
        %1406 = vmatmul.mubr.f32.gmra.mxu0 %v1334
        %v1407 = vpop.f32.mrf.mxu0
        %v1408 = vadd.f32 %v1328, %v1407
        %v1409 = vpop.f32.mrf.mxu0
        %1410 = vdwg.mxu0
        %v1411 = vld [vmem:[%s766] sm:$0xff]
        %v1412 = vld [vmem:[%s766 + $0x8] sm:$0xff]
        %v1413 = vld [vmem:[%s766 + $0x10] sm:$0xff]
        %v1414 = vld [vmem:[%s766 + $0x18] sm:$0xff]
        %v1415 = vld [vmem:[%s886] sm:$0x1]
        %v1417 = vlaneseq
        %v1418 = vshrl.u32 %v1417, 7
        %v1419 = vsub.s32 0, %v1418
        %v1420 = vrot.slane %v1415, %v1419
        %1422 = vmatprep.subr.mxu0 0.0
        %1423 = vmatpush1.msra.mxu0 0.0
        %1424 = vmatprep.subr.mxu0 0.0
        %1425 = vmatpush1.msra.mxu0 0.0
        %1426 = vmatprep.subr.mxu0 0.0
        %1427 = vmatpush1.msra.mxu0 0.0
        %1428 = vmatprep.subr.mxu0 0.0
        %1429 = vmatpush1.msra.mxu0 0.0
        %1430 = vmatprep.subr.mxu0 0.0
        %1431 = vmatpush1.msra.mxu0 0.0
        %1432 = vmatprep.subr.mxu0 0.0
        %1433 = vmatpush1.msra.mxu0 0.0
        %1434 = vmatprep.subr.mxu0 0.0
        %1435 = vmatpush1.msra.mxu0 0.0
        %1436 = vmatprep.subr.mxu0 0.0
        %1437 = vmatpush1.msra.mxu0 0.0
        %1438 = vmatprep.subr.mxu0 0.0
        %1439 = vmatpush1.msra.mxu0 0.0
        %1440 = vmatprep.subr.mxu0 0.0
        %1441 = vmatpush1.msra.mxu0 0.0
        %1442 = vmatprep.subr.mxu0 0.0
        %1443 = vmatpush1.msra.mxu0 0.0
        %1444 = vmatprep.subr.mxu0 0.0
        %1445 = vmatpush1.msra.mxu0 0.0
        %1446 = vmatprep.subr.mxu0 0.0
        %1447 = vmatpush1.msra.mxu0 %v1414
        %1448 = vmatprep.subr.mxu0 0.0
        %1449 = vmatpush1.msra.mxu0 %v1413
        %1450 = vmatprep.subr.mxu0 0.0
        %1451 = vmatpush1.msra.mxu0 %v1412
        %1452 = vmatprep.subr.mxu0 0.0
        %1453 = vmatpush1.msra.mxu0 %v1411
        %1454 = vmatprep.subr.mxu0 0.0
        %1455 = vmatpush2.msra.mxu0 0.0
        %1456 = vmatprep.subr.mxu0 0.0
        %1457 = vmatpush2.msra.mxu0 0.0
        %1458 = vmatprep.subr.mxu0 0.0
        %1459 = vmatpush2.msra.mxu0 0.0
        %1460 = vmatprep.subr.mxu0 0.0
        %1461 = vmatpush2.msra.mxu0 0.0
        %1462 = vmatprep.subr.mxu0 0.0
        %1463 = vmatpush2.msra.mxu0 0.0
        %1464 = vmatprep.subr.mxu0 0.0
        %1465 = vmatpush2.msra.mxu0 0.0
        %1466 = vmatprep.subr.mxu0 0.0
        %1467 = vmatpush2.msra.mxu0 0.0
        %1468 = vmatprep.subr.mxu0 0.0
        %1469 = vmatpush2.msra.mxu0 0.0
        %1470 = vmatprep.subr.mxu0 0.0
        %1471 = vmatpush2.msra.mxu0 0.0
        %1472 = vmatprep.subr.mxu0 0.0
        %1473 = vmatpush2.msra.mxu0 0.0
        %1474 = vmatprep.subr.mxu0 0.0
        %1475 = vmatpush2.msra.mxu0 0.0
        %1476 = vmatprep.subr.mxu0 0.0
        %1477 = vmatpush2.msra.mxu0 0.0
        %1478 = vmatprep.subr.mxu0 0.0
        %1479 = vmatpush2.msra.mxu0 0.0
        %1480 = vmatprep.subr.mxu0 0.0
        %1481 = vmatpush2.msra.mxu0 0.0
        %1482 = vmatprep.subr.mxu0 0.0
        %1483 = vmatpush2.msra.mxu0 0.0
        %1484 = vmatprep.subr.mxu0 0.0
        %1485 = vmatpush2.msra.mxu0 0.0
        %1486 = vmatprep.mubr.f32.mxu0 0.0
        %1487 = vmatmul.mubr.f32.gmra.mxu0 %v1331
        %v1488 = vpop.f32.mrf.mxu0
        %v1489 = vadd.f32 %v1420, %v1488
        %v1490 = vpop.f32.mrf.mxu0
        %1491 = vmatprep.mubr.f32.mxu0 0.0
        %1492 = vmatmul.mubr.f32.gmra.mxu0 %v1334
        %v1493 = vpop.f32.mrf.mxu0
        %v1494 = vadd.f32 %v1420, %v1493
        %v1495 = vpop.f32.mrf.mxu0
        %1496 = vdwg.mxu0
        %v1497 = vld [vmem:[%s13] sm:$0x1]
        %v1498 = vld [vmem:[%s14] sm:$0x1]
        %v1500 = vlaneseq
        %v1501 = vshrl.u32 %v1500, 7
        %v1502 = vsub.s32 0, %v1501
        %v1503 = vrot.slane %v1497, %v1502
        %v1505 = vsub.f32 %v1503, %v1489
        %v1506 = vsub.f32 %v1503, %v1494
        %v1507 = vmax.f32 %v1505, 0.0
        %v1508 = vmax.f32 %v1506, 0.0
        %v1509 = vand.u32 2147483647, %v1505
        %v1510 = vand.u32 2147483647, %v1506
        %v1511 = vsub.f32 0.0, %v1509
        %v1512 = vsub.f32 0.0, %v1510
        %v1513 = vmul.f32 %v1511, 1.442695
        %v1514 = vpow.pop %v1513
        %v1515 = vmul.f32 %v1512, 1.442695
        %v1516 = vpow.pop %v1515
        %v1517 = vadd.f32 %v1514, 1.0
        %v1518 = vadd.f32 %v1516, 1.0
        %v1519 = vlog2.pop %v1517
        %v1520 = vmul.f32 %v1519, 0.6931472
        %v1521 = vlog2.pop %v1518
        %v1522 = vmul.f32 %v1521, 0.6931472
        %v1523 = vadd.f32 %v1507, %v1520
        %v1524 = vadd.f32 %v1508, %v1522
        %v1525 = vsub.f32 %v1503, %v1523
        %v1526 = vsub.f32 %v1503, %v1524
        %v1528 = vlaneseq
        %v1529 = vshrl.u32 %v1528, 7
        %v1530 = vsub.s32 0, %v1529
        %v1531 = vrot.slane %v1498, %v1530
        %v1533 = vsub.f32 %v1525, %v1531
        %v1534 = vsub.f32 %v1526, %v1531
        %v1535 = vmax.f32 %v1533, 0.0
        %v1536 = vmax.f32 %v1534, 0.0
        %v1537 = vand.u32 2147483647, %v1533
        %v1538 = vand.u32 2147483647, %v1534
        %v1539 = vsub.f32 0.0, %v1537
        %v1540 = vsub.f32 0.0, %v1538
        %v1541 = vmul.f32 %v1539, 1.442695
        %v1542 = vpow.pop %v1541
        %v1543 = vmul.f32 %v1540, 1.442695
        %v1544 = vpow.pop %v1543
        %v1545 = vadd.f32 %v1542, 1.0
        %v1546 = vadd.f32 %v1544, 1.0
        %v1547 = vlog2.pop %v1545
        %v1548 = vmul.f32 %v1547, 0.6931472
        %v1549 = vlog2.pop %v1546
        %v1550 = vmul.f32 %v1549, 0.6931472
        %v1551 = vadd.f32 %v1535, %v1548
        %v1552 = vadd.f32 %v1536, %v1550
        %v1553 = vadd.f32 %v1531, %v1551
        %v1554 = vadd.f32 %v1531, %v1552
        %v1555 = vmul.f32 %v1553, 1.442695
        %v1556 = vpow.pop %v1555
        %v1557 = vmul.f32 %v1554, 1.442695
        %v1558 = vpow.pop %v1557
        %1559 = vst [vmem:[%s860] sm:$0xff] %v1403
        %1560 = vst [vmem:[%s860 + $0x8] sm:$0xff] %v1408
        %1561 = vst [vmem:[%s867] sm:$0xff] %v1556
        %1562 = vst [vmem:[%s867 + $0x8] sm:$0xff] %v1558
        %s1563 = sand.u32 %s450, 1
        %s1564 = scalar_lea.sflag [#allocation4], %s1563
        %s1565 = sand.u32 %s450, 1
        %s1566 = smul.addr %s1565, 16
        %s1567 = scalar_lea.vmem [#allocation14], %s1566
        %s1568 = sand.u32 %s478, 1
        %s1569 = scalar_lea.sflag [#allocation16], %s1568
        %s1570 = sand.u32 %s478, 1
        %s1571 = smul.addr %s1570, 16
        %s1572 = scalar_lea.vmem [#allocation15], %s1571
        // Predicated region
        $region109: #{tpu_custom_call.1} parent=79 // pred_check
          %p1573 = pneg %p460
        $region110: #{tpu_custom_call.1} parent=79 // pred_check_branch
          %1575 = sbr.rel (%p1573) target = $region112
        $region111: #{tpu_custom_call.1} parent=79 // pred_region
          %s1576 = smul.u32 2, %s51
          %s1578 = ssub.s32 256, 256
          %1579 = vsyncadd %s1564, %s1578
          %s1580 = smul.addr %s50, 2
          %s1581 = sadd.s32 %s1576, %s1580
          %s1582 = smul.addr %s1581, 128
          %s1583 = scalar_lea.hbm %s15, %s1582
          %s1584 = sshll.u32 %s1567, 4
          %s1585 = int_to_ptr.vmem [resolvable:$true] %s1584
          %1590 = dma.vmem_to_hbm [thread:$0]  %s1585, 256, %s1583, %s1564, 128, 128, 8
        $region112: #{tpu_custom_call.1} parent=79 // pred_fallthru
          _
        // Predicated region
        $region113: #{tpu_custom_call.1} parent=79 // pred_check
          %p1591 = pneg %p488
        $region114: #{tpu_custom_call.1} parent=79 // pred_check_branch
          %1593 = sbr.rel (%p1591) target = $region116
        $region115: #{tpu_custom_call.1} parent=79 // pred_region
          %s1594 = smul.u32 2, %s51
          %s1596 = ssub.s32 256, 256
          %1597 = vsyncadd %s1569, %s1596
          %s1598 = smul.addr %s50, 2
          %s1599 = sadd.s32 %s1594, %s1598
          %s1600 = smul.addr %s1599, 128
          %s1601 = scalar_lea.hbm %s16, %s1600
          %s1602 = sshll.u32 %s1572, 4
          %s1603 = int_to_ptr.vmem [resolvable:$true] %s1602
          %1608 = dma.vmem_to_hbm [thread:$0]  %s1603, 256, %s1601, %s1569, 128, 128, 8
        $region116: #{tpu_custom_call.1} parent=79 // pred_fallthru
          _
      $region80: #{tpu_custom_call.1} parent=5 // pred_fallthru
        _
      %p1609 = scmp.le.s32.totalorder 2, %s41
      // Predicated region
      $region117: #{tpu_custom_call.1} parent=5 // pred_check
        %p1610 = pneg %p1609
      $region118: #{tpu_custom_call.1} parent=5 // pred_check_branch
        %1612 = sbr.rel (%p1610) target = $region120
      $region119: #{tpu_custom_call.1} parent=5 // pred_region
        %s1613 = ssub.s32 %s41, 2
        // Predicated region
        $region121: #{tpu_custom_call.1} parent=119 // pred_check
          %p1614 = pneg %p466
        $region122: #{tpu_custom_call.1} parent=119 // pred_check_branch
          %1616 = sbr.rel (%p1614) target = $region124
        $region123: #{tpu_custom_call.1} parent=119 // pred_region
          %s1617 = sand.u32 %s451, 1
          %s1618 = scalar_lea.sflag [#allocation4], %s1617
          %s1619 = sand.u32 %s451, 1
          %s1620 = smul.addr %s1619, 16
          %s1621 = scalar_lea.vmem [#allocation14], %s1620
          %1622 = dma.done %s1618, 256
        $region124: #{tpu_custom_call.1} parent=119 // pred_fallthru
          _
        // Predicated region
        $region125: #{tpu_custom_call.1} parent=119 // pred_check
          %p1623 = pneg %p494
        $region126: #{tpu_custom_call.1} parent=119 // pred_check_branch
          %1625 = sbr.rel (%p1623) target = $region128
        $region127: #{tpu_custom_call.1} parent=119 // pred_region
          %s1626 = sand.u32 %s479, 1
          %s1627 = scalar_lea.sflag [#allocation16], %s1626
          %s1628 = sand.u32 %s479, 1
          %s1629 = smul.addr %s1628, 16
          %s1630 = scalar_lea.vmem [#allocation15], %s1629
          %1631 = dma.done %s1627, 256
        $region128: #{tpu_custom_call.1} parent=119 // pred_fallthru
          _
      $region120: #{tpu_custom_call.1} parent=5 // pred_fallthru
        _
    $region6: #{tpu_custom_call.1} parent=1 // loop_footer
      %s45 = sadd.s32 1, %s41
    $region7: #{tpu_custom_call.1} parent=1 // loop_footer_branch
      %40 = sbr.rel target = $region3
    $region8: #{tpu_custom_call.1} parent=1 // loop_exit
      _
    %1632 = vsyncpa [#allocation3], 1
    %s1633 = scalar_lea.sflag [#allocation3], 1
    %1634 = vsyncpa %s1633, 1
    %1635 = vsyncpa [#allocation6], 1
    %s1636 = scalar_lea.sflag [#allocation6], 1
    %1637 = vsyncpa %s1636, 1
    %1638 = vsyncpa [#allocation9], 1
    %s1639 = scalar_lea.sflag [#allocation9], 1
    %1640 = vsyncpa %s1639, 1
    %1641 = vsyncpa [#allocation12], 1
    %s1642 = scalar_lea.sflag [#allocation12], 1
    %1643 = vsyncpa %s1642, 1
    %1644 = vsyncpa [#allocation4], 1
    %s1645 = scalar_lea.sflag [#allocation4], 1
    %1646 = vsyncpa %s1645, 1
    %1647 = vsyncpa [#allocation16], 1
    %s1648 = scalar_lea.sflag [#allocation16], 1
    %1649 = vsyncpa %s1648, 1

</llo_original>
